<compile_context>
chip_gen: v6e
topology: v6e:2x2x1
jax: 0.10.0
libtpu: 0.0.40
codegen_flags: <defaults>
</compile_context>

<pallas_src>
import jax
import jax.numpy as jnp
from jax.experimental import pallas as pl
from jax.experimental.pallas import tpu as pltpu

# Model dims fixed by Method_RNN.__init__
EMBEDDING_DIM = 100
HIDDEN_SIZE = 256
DENSE_HIDDEN = 128
NUM_LAYERS = 2      # hard-coded as two explicitly fused layers in the kernel
LANE = 128


def _round_up(x, m):
    return ((x + m - 1) // m) * m


def rnn_forward_kernel(emb_ref, w0_ref, b0_ref, w1_ref, b1_ref,
                       w_fc1_ref, b_fc1_ref, w_fc2_ref, b_fc2_ref,
                       logits_ref):
    """2-layer tanh RNN recurrence (fused matmuls) + 2 dense layers.

    emb_ref:   (T, TB, E_pad)      bf16  (time-major -> emb_ref[t] is one tile)
    w0:        (E_pad + H, H)      bf16  fused [W_ih0; W_hh0]
    b0:        (1, H)              f32   (b_ih0 + b_hh0)
    w1:        (2H, H)             bf16  fused [W_ih1; W_hh1]
    b1:        (1, H)              f32
    w_fc1:     (H, D)  bf16        b_fc1: (1, D)     f32
    w_fc2:     (D, V_pad) bf16     b_fc2: (1, V_pad) f32
    logits_ref:(TB, V_pad)         f32
    """
    T, TB, _ = emb_ref.shape
    H = w0_ref.shape[1]

    # Hoisted weight / bias loads (the static unroll below would otherwise
    # re-materialize the broadcasts every timestep).
    w0 = w0_ref[...]
    w1 = w1_ref[...]
    b0 = jnp.broadcast_to(b0_ref[...], (TB, H))
    b1 = jnp.broadcast_to(b1_ref[...], (TB, H))

    # Loop-carried hidden states live in vregs, never round-trip VMEM.
    h0 = jnp.zeros((TB, H), jnp.float32)
    h1 = jnp.zeros((TB, H), jnp.float32)

    # Static unroll over timesteps (T is a small compile-time constant here).
    # TODO(synk): for long sequences switch to lax.fori_loop(..., unroll=4-8)
    # with emb_ref[t] leading-axis dynamic indexing to bound live ranges.
    for t in range(T):
        x_t = emb_ref[t]                                           # (TB, E_pad) bf16
        xh0 = jnp.concatenate([x_t, h0.astype(jnp.bfloat16)], axis=-1)
        h0 = jnp.tanh(
            jnp.dot(xh0, w0, preferred_element_type=jnp.float32) + b0)
        xh1 = jnp.concatenate(
            [h0.astype(jnp.bfloat16), h1.astype(jnp.bfloat16)], axis=-1)
        h1 = jnp.tanh(
            jnp.dot(xh1, w1, preferred_element_type=jnp.float32) + b1)

    # outputs[:, -1, :] == last-layer hidden state at the final timestep.
    # TODO(synk): nn.Dropout(0.5) is identity at inference (eval mode);
    # training-mode stochastic mask (pltpu.prng_*) is omitted here.
    dense = (jnp.dot(h1.astype(jnp.bfloat16), w_fc1_ref[...],
                     preferred_element_type=jnp.float32)
             + b_fc1_ref[...])
    logits_ref[...] = (jnp.dot(dense.astype(jnp.bfloat16), w_fc2_ref[...],
                               preferred_element_type=jnp.float32)
                       + b_fc2_ref[...])


def prepare_params(raw):
    """PyTorch-layout params -> fused / lane-padded / bf16 kernel params."""
    E, H, D = EMBEDDING_DIM, HIDDEN_SIZE, DENSE_HIDDEN
    V = raw["embedding"].shape[0]
    E_pad = _round_up(E, LANE)
    V_pad = _round_up(V, LANE)

    # Embedding table: zero-pad feature dim to 128 lanes, cast to bf16.
    emb = jnp.zeros((V, E_pad), jnp.float32).at[:, :E].set(raw["embedding"])
    emb = emb.astype(jnp.bfloat16)

    # Layer 0: transpose to (in, out), zero-pad E rows, fuse [W_ih; W_hh].
    w_ih0 = jnp.zeros((E_pad, H), jnp.float32).at[:E, :].set(raw["w_ih0"].T)
    w0 = jnp.concatenate([w_ih0, raw["w_hh0"].T], axis=0).astype(jnp.bfloat16)
    b0 = (raw["b_ih0"] + raw["b_hh0"])[None, :].astype(jnp.float32)

    # Layer 1: fuse [W_ih; W_hh] -> (2H, H).
    w1 = jnp.concatenate([raw["w_ih1"].T, raw["w_hh1"].T],
                         axis=0).astype(jnp.bfloat16)
    b1 = (raw["b_ih1"] + raw["b_hh1"])[None, :].astype(jnp.float32)

    # Dense layers (nn.Linear stores (out, in) -> pre-transpose).
    w_fc1 = raw["w_fc1"].T.astype(jnp.bfloat16)                    # (H, D)
    b_fc1 = raw["b_fc1"][None, :].astype(jnp.float32)
    w_fc2 = (jnp.zeros((D, V_pad), jnp.float32)
             .at[:, :V].set(raw["w_fc2"].T)).astype(jnp.bfloat16)  # (D, V_pad)
    b_fc2 = jnp.zeros((1, V_pad), jnp.float32).at[:, :V].set(raw["b_fc2"])

    return {"embedding": emb, "w0": w0, "b0": b0, "w1": w1, "b1": b1,
            "w_fc1": w_fc1, "b_fc1": b_fc1, "w_fc2": w_fc2, "b_fc2": b_fc2,
            "vocab_size": V, "v_pad": V_pad}


def method_rnn_forward(tokens, kp, *, batch_tile=16):
    """tokens: (B, T) int32 -> logits (B, vocab_size) float32."""
    B, T = tokens.shape
    E_pad = kp["embedding"].shape[1]
    V, V_pad = kp["vocab_size"], kp["v_pad"]

    # Embedding lookup (gather) stays in plain JAX glue; time-major layout so
    # each in-kernel timestep slice is a contiguous (sublane=B, lane=E) tile.
    emb = jnp.take(kp["embedding"], tokens.T, axis=0)              # (T, B, E_pad) bf16

    # Pad batch to the batch tile (bf16-native 16-sublane packing).  For real
    # workloads use 128-256 rows per tile to keep the MXU full; the recurrence
    # itself is latency-bound over T.
    B_pad = _round_up(max(B, batch_tile), batch_tile)
    if B_pad != B:
        emb = jnp.pad(emb, ((0, 0), (0, B_pad - B), (0, 0)))

    grid = (B_pad // batch_tile,)
    w_spec = lambda a: pl.BlockSpec(a.shape, lambda i: (0,) * a.ndim)

    logits_pad = pl.pallas_call(
        rnn_forward_kernel,
        out_shape=jax.ShapeDtypeStruct((B_pad, V_pad), jnp.float32),
        grid=grid,
        in_specs=[
            pl.BlockSpec((T, batch_tile, E_pad), lambda i: (0, i, 0)),
            w_spec(kp["w0"]), w_spec(kp["b0"]),
            w_spec(kp["w1"]), w_spec(kp["b1"]),
            w_spec(kp["w_fc1"]), w_spec(kp["b_fc1"]),
            w_spec(kp["w_fc2"]), w_spec(kp["b_fc2"]),
        ],
        out_specs=pl.BlockSpec((batch_tile, V_pad), lambda i: (i, 0)),
        compiler_params=pltpu.CompilerParams(
            dimension_semantics=("parallel",)),
    )(emb, kp["w0"], kp["b0"], kp["w1"], kp["b1"],
      kp["w_fc1"], kp["b_fc1"], kp["w_fc2"], kp["b_fc2"])

    # Slice away batch / vocab padding (padded vocab lanes are exact zeros).
    return logits_pad[:B, :V]


def init_params(key, vocab_size):
    """Deterministic synthetic params in PyTorch layout (Method_RNN shapes)."""
    E, H, D, V = EMBEDDING_DIM, HIDDEN_SIZE, DENSE_HIDDEN, vocab_size
    ks = jax.random.split(key, 12)
    s = 0.05
    return {
        "embedding": s * jax.random.normal(ks[0], (V, E), jnp.float32),
        # nn.RNN layout: W_ih (H, in), W_hh (H, H)
        "w_ih0": s * jax.random.normal(ks[1], (H, E), jnp.float32),
        "w_hh0": s * jax.random.normal(ks[2], (H, H), jnp.float32),
        "b_ih0": s * jax.random.normal(ks[3], (H,), jnp.float32),
        "b_hh0": s * jax.random.normal(ks[4], (H,), jnp.float32),
        "w_ih1": s * jax.random.normal(ks[5], (H, H), jnp.float32),
        "w_hh1": s * jax.random.normal(ks[6], (H, H), jnp.float32),
        "b_ih1": s * jax.random.normal(ks[7], (H,), jnp.float32),
        "b_hh1": s * jax.random.normal(ks[8], (H,), jnp.float32),
        # nn.Linear layout: weight (out, in)
        "w_fc1": s * jax.random.normal(ks[9], (D, H), jnp.float32),
        "b_fc1": s * jax.random.normal(ks[10], (D,), jnp.float32),
        "w_fc2": s * jax.random.normal(ks[11], (V, D), jnp.float32),
        "b_fc2": jnp.zeros((V,), jnp.float32),
    }


if __name__ == "__main__":
    key = jax.random.PRNGKey(0)
    vocab_size = 64   # small synthetic vocab
    B, T = 2, 8       # small batch / sequence length

    k_param, k_tok = jax.random.split(key)
    raw = init_params(k_param, vocab_size)
    kernel_params = prepare_params(raw)
    tokens = jax.random.randint(k_tok, (B, T), 0, vocab_size, dtype=jnp.int32)

    logits = method_rnn_forward(tokens, kernel_params)
    jax.block_until_ready(logits)
    assert logits.shape == (B, vocab_size) and logits.dtype == jnp.float32
    assert bool(jnp.all(jnp.isfinite(logits)))
    print("KERNEL_OK")
</pallas_src>

<mosaic_0001>
module attributes {stable_mosaic.version = 11 : i64} {
  func.func @rnn_forward_kernel(%arg0: i32, %arg1: memref<8x16x128xbf16, #tpu.memory_space<vmem>>, %arg2: memref<384x256xbf16, #tpu.memory_space<vmem>>, %arg3: memref<1x256xf32, #tpu.memory_space<vmem>>, %arg4: memref<512x256xbf16, #tpu.memory_space<vmem>>, %arg5: memref<1x256xf32, #tpu.memory_space<vmem>>, %arg6: memref<256x128xbf16, #tpu.memory_space<vmem>>, %arg7: memref<1x128xf32, #tpu.memory_space<vmem>>, %arg8: memref<128x128xbf16, #tpu.memory_space<vmem>>, %arg9: memref<1x128xf32, #tpu.memory_space<vmem>>, %arg10: memref<16x128xf32, #tpu.memory_space<vmem>>) attributes {dimension_semantics = [#tpu.dimension_semantics<parallel>], iteration_bounds = array<i64: 1>, scalar_prefetch = 0 : i64, scratch_operands = 0 : i64, tpu.core_type = #tpu.core_type<tc>, window_params = [{transform_indices = @transform_0, window_bounds = array<i64: 8, 16, 128>}, {pipeline_mode = #tpu.pipeline_mode<synchronous>, transform_indices = @transform_1, window_bounds = array<i64: 384, 256>}, {pipeline_mode = #tpu.pipeline_mode<synchronous>, transform_indices = @transform_2, window_bounds = array<i64: 1, 256>}, {pipeline_mode = #tpu.pipeline_mode<synchronous>, transform_indices = @transform_3, window_bounds = array<i64: 512, 256>}, {pipeline_mode = #tpu.pipeline_mode<synchronous>, transform_indices = @transform_4, window_bounds = array<i64: 1, 256>}, {pipeline_mode = #tpu.pipeline_mode<synchronous>, transform_indices = @transform_5, window_bounds = array<i64: 256, 128>}, {pipeline_mode = #tpu.pipeline_mode<synchronous>, transform_indices = @transform_6, window_bounds = array<i64: 1, 128>}, {pipeline_mode = #tpu.pipeline_mode<synchronous>, transform_indices = @transform_7, window_bounds = array<i64: 128, 128>}, {pipeline_mode = #tpu.pipeline_mode<synchronous>, transform_indices = @transform_8, window_bounds = array<i64: 1, 128>}, {transform_indices = @transform_9, window_bounds = array<i64: 16, 128>}]} {
    %c0 = arith.constant 0 : index
    %c0_0 = arith.constant 0 : index
    %0 = vector.load %arg2[%c0, %c0_0] : memref<384x256xbf16, #tpu.memory_space<vmem>>, vector<384x256xbf16>
    %c0_1 = arith.constant 0 : index
    %c0_2 = arith.constant 0 : index
    %1 = vector.load %arg4[%c0_1, %c0_2] : memref<512x256xbf16, #tpu.memory_space<vmem>>, vector<512x256xbf16>
    %c0_3 = arith.constant 0 : index
    %c0_4 = arith.constant 0 : index
    %2 = vector.load %arg3[%c0_3, %c0_4] : memref<1x256xf32, #tpu.memory_space<vmem>>, vector<1x256xf32>
    %3 = vector.shape_cast %2 : vector<1x256xf32> to vector<1x256xf32>
    %4 = vector.broadcast %3 : vector<1x256xf32> to vector<16x256xf32>
    %c0_5 = arith.constant 0 : index
    %c0_6 = arith.constant 0 : index
    %5 = vector.load %arg5[%c0_5, %c0_6] : memref<1x256xf32, #tpu.memory_space<vmem>>, vector<1x256xf32>
    %6 = vector.shape_cast %5 : vector<1x256xf32> to vector<1x256xf32>
    %7 = vector.broadcast %6 : vector<1x256xf32> to vector<16x256xf32>
    %cst = arith.constant 0.000000e+00 : f32
    %8 = vector.broadcast %cst : f32 to vector<16x256xf32>
    %cst_7 = arith.constant 0.000000e+00 : f32
    %9 = vector.broadcast %cst_7 : f32 to vector<16x256xf32>
    %c0_8 = arith.constant 0 : index
    %c0_9 = arith.constant 0 : index
    %c0_10 = arith.constant 0 : index
    %10 = vector.load %arg1[%c0_8, %c0_9, %c0_10] : memref<8x16x128xbf16, #tpu.memory_space<vmem>>, vector<1x16x128xbf16>
    %11 = vector.shape_cast %10 : vector<1x16x128xbf16> to vector<16x128xbf16>
    %12 = arith.truncf %8 : vector<16x256xf32> to vector<16x256xbf16>
    %13 = tpu.concatenate %11, %12 in 1 : vector<16x128xbf16>, vector<16x256xbf16> -> vector<16x384xbf16>
    %cst_11 = arith.constant dense<0.000000e+00> : vector<16x256xf32>
    %14 = tpu.matmul %13, %0, %cst_11 {dimension_numbers = #tpu.dot_dimension_numbers<[1], [0], [0], [1], [0, 0, 1, 1], [], []>} : vector<16x384xbf16>, vector<384x256xbf16>, vector<16x256xf32> -> vector<16x256xf32>
    %15 = arith.addf %14, %4 : vector<16x256xf32>
    %16 = math.tanh %15 : vector<16x256xf32>
    %17 = arith.truncf %16 : vector<16x256xf32> to vector<16x256xbf16>
    %18 = arith.truncf %9 : vector<16x256xf32> to vector<16x256xbf16>
    %19 = tpu.concatenate %17, %18 in 1 : vector<16x256xbf16>, vector<16x256xbf16> -> vector<16x512xbf16>
    %cst_12 = arith.constant dense<0.000000e+00> : vector<16x256xf32>
    %20 = tpu.matmul %19, %1, %cst_12 {dimension_numbers = #tpu.dot_dimension_numbers<[1], [0], [0], [1], [0, 0, 1, 1], [], []>} : vector<16x512xbf16>, vector<512x256xbf16>, vector<16x256xf32> -> vector<16x256xf32>
    %21 = arith.addf %20, %7 : vector<16x256xf32>
    %22 = math.tanh %21 : vector<16x256xf32>
    %c1 = arith.constant 1 : index
    %c0_13 = arith.constant 0 : index
    %c0_14 = arith.constant 0 : index
    %23 = vector.load %arg1[%c1, %c0_13, %c0_14] : memref<8x16x128xbf16, #tpu.memory_space<vmem>>, vector<1x16x128xbf16>
    %24 = vector.shape_cast %23 : vector<1x16x128xbf16> to vector<16x128xbf16>
    %25 = arith.truncf %16 : vector<16x256xf32> to vector<16x256xbf16>
    %26 = tpu.concatenate %24, %25 in 1 : vector<16x128xbf16>, vector<16x256xbf16> -> vector<16x384xbf16>
    %cst_15 = arith.constant dense<0.000000e+00> : vector<16x256xf32>
    %27 = tpu.matmul %26, %0, %cst_15 {dimension_numbers = #tpu.dot_dimension_numbers<[1], [0], [0], [1], [0, 0, 1, 1], [], []>} : vector<16x384xbf16>, vector<384x256xbf16>, vector<16x256xf32> -> vector<16x256xf32>
    %28 = arith.addf %27, %4 : vector<16x256xf32>
    %29 = math.tanh %28 : vector<16x256xf32>
    %30 = arith.truncf %29 : vector<16x256xf32> to vector<16x256xbf16>
    %31 = arith.truncf %22 : vector<16x256xf32> to vector<16x256xbf16>
    %32 = tpu.concatenate %30, %31 in 1 : vector<16x256xbf16>, vector<16x256xbf16> -> vector<16x512xbf16>
    %cst_16 = arith.constant dense<0.000000e+00> : vector<16x256xf32>
    %33 = tpu.matmul %32, %1, %cst_16 {dimension_numbers = #tpu.dot_dimension_numbers<[1], [0], [0], [1], [0, 0, 1, 1], [], []>} : vector<16x512xbf16>, vector<512x256xbf16>, vector<16x256xf32> -> vector<16x256xf32>
    %34 = arith.addf %33, %7 : vector<16x256xf32>
    %35 = math.tanh %34 : vector<16x256xf32>
    %c2 = arith.constant 2 : index
    %c0_17 = arith.constant 0 : index
    %c0_18 = arith.constant 0 : index
    %36 = vector.load %arg1[%c2, %c0_17, %c0_18] : memref<8x16x128xbf16, #tpu.memory_space<vmem>>, vector<1x16x128xbf16>
    %37 = vector.shape_cast %36 : vector<1x16x128xbf16> to vector<16x128xbf16>
    %38 = arith.truncf %29 : vector<16x256xf32> to vector<16x256xbf16>
    %39 = tpu.concatenate %37, %38 in 1 : vector<16x128xbf16>, vector<16x256xbf16> -> vector<16x384xbf16>
    %cst_19 = arith.constant dense<0.000000e+00> : vector<16x256xf32>
    %40 = tpu.matmul %39, %0, %cst_19 {dimension_numbers = #tpu.dot_dimension_numbers<[1], [0], [0], [1], [0, 0, 1, 1], [], []>} : vector<16x384xbf16>, vector<384x256xbf16>, vector<16x256xf32> -> vector<16x256xf32>
    %41 = arith.addf %40, %4 : vector<16x256xf32>
    %42 = math.tanh %41 : vector<16x256xf32>
    %43 = arith.truncf %42 : vector<16x256xf32> to vector<16x256xbf16>
    %44 = arith.truncf %35 : vector<16x256xf32> to vector<16x256xbf16>
    %45 = tpu.concatenate %43, %44 in 1 : vector<16x256xbf16>, vector<16x256xbf16> -> vector<16x512xbf16>
    %cst_20 = arith.constant dense<0.000000e+00> : vector<16x256xf32>
    %46 = tpu.matmul %45, %1, %cst_20 {dimension_numbers = #tpu.dot_dimension_numbers<[1], [0], [0], [1], [0, 0, 1, 1], [], []>} : vector<16x512xbf16>, vector<512x256xbf16>, vector<16x256xf32> -> vector<16x256xf32>
    %47 = arith.addf %46, %7 : vector<16x256xf32>
    %48 = math.tanh %47 : vector<16x256xf32>
    %c3 = arith.constant 3 : index
    %c0_21 = arith.constant 0 : index
    %c0_22 = arith.constant 0 : index
    %49 = vector.load %arg1[%c3, %c0_21, %c0_22] : memref<8x16x128xbf16, #tpu.memory_space<vmem>>, vector<1x16x128xbf16>
    %50 = vector.shape_cast %49 : vector<1x16x128xbf16> to vector<16x128xbf16>
    %51 = arith.truncf %42 : vector<16x256xf32> to vector<16x256xbf16>
    %52 = tpu.concatenate %50, %51 in 1 : vector<16x128xbf16>, vector<16x256xbf16> -> vector<16x384xbf16>
    %cst_23 = arith.constant dense<0.000000e+00> : vector<16x256xf32>
    %53 = tpu.matmul %52, %0, %cst_23 {dimension_numbers = #tpu.dot_dimension_numbers<[1], [0], [0], [1], [0, 0, 1, 1], [], []>} : vector<16x384xbf16>, vector<384x256xbf16>, vector<16x256xf32> -> vector<16x256xf32>
    %54 = arith.addf %53, %4 : vector<16x256xf32>
    %55 = math.tanh %54 : vector<16x256xf32>
    %56 = arith.truncf %55 : vector<16x256xf32> to vector<16x256xbf16>
    %57 = arith.truncf %48 : vector<16x256xf32> to vector<16x256xbf16>
    %58 = tpu.concatenate %56, %57 in 1 : vector<16x256xbf16>, vector<16x256xbf16> -> vector<16x512xbf16>
    %cst_24 = arith.constant dense<0.000000e+00> : vector<16x256xf32>
    %59 = tpu.matmul %58, %1, %cst_24 {dimension_numbers = #tpu.dot_dimension_numbers<[1], [0], [0], [1], [0, 0, 1, 1], [], []>} : vector<16x512xbf16>, vector<512x256xbf16>, vector<16x256xf32> -> vector<16x256xf32>
    %60 = arith.addf %59, %7 : vector<16x256xf32>
    %61 = math.tanh %60 : vector<16x256xf32>
    %c4 = arith.constant 4 : index
    %c0_25 = arith.constant 0 : index
    %c0_26 = arith.constant 0 : index
    %62 = vector.load %arg1[%c4, %c0_25, %c0_26] : memref<8x16x128xbf16, #tpu.memory_space<vmem>>, vector<1x16x128xbf16>
    %63 = vector.shape_cast %62 : vector<1x16x128xbf16> to vector<16x128xbf16>
    %64 = arith.truncf %55 : vector<16x256xf32> to vector<16x256xbf16>
    %65 = tpu.concatenate %63, %64 in 1 : vector<16x128xbf16>, vector<16x256xbf16> -> vector<16x384xbf16>
    %cst_27 = arith.constant dense<0.000000e+00> : vector<16x256xf32>
    %66 = tpu.matmul %65, %0, %cst_27 {dimension_numbers = #tpu.dot_dimension_numbers<[1], [0], [0], [1], [0, 0, 1, 1], [], []>} : vector<16x384xbf16>, vector<384x256xbf16>, vector<16x256xf32> -> vector<16x256xf32>
    %67 = arith.addf %66, %4 : vector<16x256xf32>
    %68 = math.tanh %67 : vector<16x256xf32>
    %69 = arith.truncf %68 : vector<16x256xf32> to vector<16x256xbf16>
    %70 = arith.truncf %61 : vector<16x256xf32> to vector<16x256xbf16>
    %71 = tpu.concatenate %69, %70 in 1 : vector<16x256xbf16>, vector<16x256xbf16> -> vector<16x512xbf16>
    %cst_28 = arith.constant dense<0.000000e+00> : vector<16x256xf32>
    %72 = tpu.matmul %71, %1, %cst_28 {dimension_numbers = #tpu.dot_dimension_numbers<[1], [0], [0], [1], [0, 0, 1, 1], [], []>} : vector<16x512xbf16>, vector<512x256xbf16>, vector<16x256xf32> -> vector<16x256xf32>
    %73 = arith.addf %72, %7 : vector<16x256xf32>
    %74 = math.tanh %73 : vector<16x256xf32>
    %c5 = arith.constant 5 : index
    %c0_29 = arith.constant 0 : index
    %c0_30 = arith.constant 0 : index
    %75 = vector.load %arg1[%c5, %c0_29, %c0_30] : memref<8x16x128xbf16, #tpu.memory_space<vmem>>, vector<1x16x128xbf16>
    %76 = vector.shape_cast %75 : vector<1x16x128xbf16> to vector<16x128xbf16>
    %77 = arith.truncf %68 : vector<16x256xf32> to vector<16x256xbf16>
    %78 = tpu.concatenate %76, %77 in 1 : vector<16x128xbf16>, vector<16x256xbf16> -> vector<16x384xbf16>
    %cst_31 = arith.constant dense<0.000000e+00> : vector<16x256xf32>
    %79 = tpu.matmul %78, %0, %cst_31 {dimension_numbers = #tpu.dot_dimension_numbers<[1], [0], [0], [1], [0, 0, 1, 1], [], []>} : vector<16x384xbf16>, vector<384x256xbf16>, vector<16x256xf32> -> vector<16x256xf32>
    %80 = arith.addf %79, %4 : vector<16x256xf32>
    %81 = math.tanh %80 : vector<16x256xf32>
    %82 = arith.truncf %81 : vector<16x256xf32> to vector<16x256xbf16>
    %83 = arith.truncf %74 : vector<16x256xf32> to vector<16x256xbf16>
    %84 = tpu.concatenate %82, %83 in 1 : vector<16x256xbf16>, vector<16x256xbf16> -> vector<16x512xbf16>
    %cst_32 = arith.constant dense<0.000000e+00> : vector<16x256xf32>
    %85 = tpu.matmul %84, %1, %cst_32 {dimension_numbers = #tpu.dot_dimension_numbers<[1], [0], [0], [1], [0, 0, 1, 1], [], []>} : vector<16x512xbf16>, vector<512x256xbf16>, vector<16x256xf32> -> vector<16x256xf32>
    %86 = arith.addf %85, %7 : vector<16x256xf32>
    %87 = math.tanh %86 : vector<16x256xf32>
    %c6 = arith.constant 6 : index
    %c0_33 = arith.constant 0 : index
    %c0_34 = arith.constant 0 : index
    %88 = vector.load %arg1[%c6, %c0_33, %c0_34] : memref<8x16x128xbf16, #tpu.memory_space<vmem>>, vector<1x16x128xbf16>
    %89 = vector.shape_cast %88 : vector<1x16x128xbf16> to vector<16x128xbf16>
    %90 = arith.truncf %81 : vector<16x256xf32> to vector<16x256xbf16>
    %91 = tpu.concatenate %89, %90 in 1 : vector<16x128xbf16>, vector<16x256xbf16> -> vector<16x384xbf16>
    %cst_35 = arith.constant dense<0.000000e+00> : vector<16x256xf32>
    %92 = tpu.matmul %91, %0, %cst_35 {dimension_numbers = #tpu.dot_dimension_numbers<[1], [0], [0], [1], [0, 0, 1, 1], [], []>} : vector<16x384xbf16>, vector<384x256xbf16>, vector<16x256xf32> -> vector<16x256xf32>
    %93 = arith.addf %92, %4 : vector<16x256xf32>
    %94 = math.tanh %93 : vector<16x256xf32>
    %95 = arith.truncf %94 : vector<16x256xf32> to vector<16x256xbf16>
    %96 = arith.truncf %87 : vector<16x256xf32> to vector<16x256xbf16>
    %97 = tpu.concatenate %95, %96 in 1 : vector<16x256xbf16>, vector<16x256xbf16> -> vector<16x512xbf16>
    %cst_36 = arith.constant dense<0.000000e+00> : vector<16x256xf32>
    %98 = tpu.matmul %97, %1, %cst_36 {dimension_numbers = #tpu.dot_dimension_numbers<[1], [0], [0], [1], [0, 0, 1, 1], [], []>} : vector<16x512xbf16>, vector<512x256xbf16>, vector<16x256xf32> -> vector<16x256xf32>
    %99 = arith.addf %98, %7 : vector<16x256xf32>
    %100 = math.tanh %99 : vector<16x256xf32>
    %c7 = arith.constant 7 : index
    %c0_37 = arith.constant 0 : index
    %c0_38 = arith.constant 0 : index
    %101 = vector.load %arg1[%c7, %c0_37, %c0_38] : memref<8x16x128xbf16, #tpu.memory_space<vmem>>, vector<1x16x128xbf16>
    %102 = vector.shape_cast %101 : vector<1x16x128xbf16> to vector<16x128xbf16>
    %103 = arith.truncf %94 : vector<16x256xf32> to vector<16x256xbf16>
    %104 = tpu.concatenate %102, %103 in 1 : vector<16x128xbf16>, vector<16x256xbf16> -> vector<16x384xbf16>
    %cst_39 = arith.constant dense<0.000000e+00> : vector<16x256xf32>
    %105 = tpu.matmul %104, %0, %cst_39 {dimension_numbers = #tpu.dot_dimension_numbers<[1], [0], [0], [1], [0, 0, 1, 1], [], []>} : vector<16x384xbf16>, vector<384x256xbf16>, vector<16x256xf32> -> vector<16x256xf32>
    %106 = arith.addf %105, %4 : vector<16x256xf32>
    %107 = math.tanh %106 : vector<16x256xf32>
    %108 = arith.truncf %107 : vector<16x256xf32> to vector<16x256xbf16>
    %109 = arith.truncf %100 : vector<16x256xf32> to vector<16x256xbf16>
    %110 = tpu.concatenate %108, %109 in 1 : vector<16x256xbf16>, vector<16x256xbf16> -> vector<16x512xbf16>
    %cst_40 = arith.constant dense<0.000000e+00> : vector<16x256xf32>
    %111 = tpu.matmul %110, %1, %cst_40 {dimension_numbers = #tpu.dot_dimension_numbers<[1], [0], [0], [1], [0, 0, 1, 1], [], []>} : vector<16x512xbf16>, vector<512x256xbf16>, vector<16x256xf32> -> vector<16x256xf32>
    %112 = arith.addf %111, %7 : vector<16x256xf32>
    %113 = math.tanh %112 : vector<16x256xf32>
    %114 = arith.truncf %113 : vector<16x256xf32> to vector<16x256xbf16>
    %c0_41 = arith.constant 0 : index
    %c0_42 = arith.constant 0 : index
    %115 = vector.load %arg6[%c0_41, %c0_42] : memref<256x128xbf16, #tpu.memory_space<vmem>>, vector<256x128xbf16>
    %cst_43 = arith.constant dense<0.000000e+00> : vector<16x128xf32>
    %116 = tpu.matmul %114, %115, %cst_43 {dimension_numbers = #tpu.dot_dimension_numbers<[1], [0], [0], [1], [0, 0, 1, 1], [], []>} : vector<16x256xbf16>, vector<256x128xbf16>, vector<16x128xf32> -> vector<16x128xf32>
    %c0_44 = arith.constant 0 : index
    %c0_45 = arith.constant 0 : index
    %117 = vector.load %arg7[%c0_44, %c0_45] : memref<1x128xf32, #tpu.memory_space<vmem>>, vector<1x128xf32>
    %118 = vector.broadcast %117 : vector<1x128xf32> to vector<16x128xf32>
    %119 = arith.addf %116, %118 : vector<16x128xf32>
    %120 = arith.truncf %119 : vector<16x128xf32> to vector<16x128xbf16>
    %c0_46 = arith.constant 0 : index
    %c0_47 = arith.constant 0 : index
    %121 = vector.load %arg8[%c0_46, %c0_47] : memref<128x128xbf16, #tpu.memory_space<vmem>>, vector<128x128xbf16>
    %cst_48 = arith.constant dense<0.000000e+00> : vector<16x128xf32>
    %122 = tpu.matmul %120, %121, %cst_48 {dimension_numbers = #tpu.dot_dimension_numbers<[1], [0], [0], [1], [0, 0, 1, 1], [], []>} : vector<16x128xbf16>, vector<128x128xbf16>, vector<16x128xf32> -> vector<16x128xf32>
    %c0_49 = arith.constant 0 : index
    %c0_50 = arith.constant 0 : index
    %123 = vector.load %arg9[%c0_49, %c0_50] : memref<1x128xf32, #tpu.memory_space<vmem>>, vector<1x128xf32>
    %124 = vector.broadcast %123 : vector<1x128xf32> to vector<16x128xf32>
    %125 = arith.addf %122, %124 : vector<16x128xf32>
    %c0_51 = arith.constant 0 : index
    %c0_52 = arith.constant 0 : index
    %126 = vector.load %arg10[%c0_51, %c0_52] : memref<16x128xf32, #tpu.memory_space<vmem>>, vector<16x128xf32>
    tpu.vector_store %arg10[%c0_51, %c0_52], %125 {strides = array<i32>} : memref<16x128xf32, #tpu.memory_space<vmem>>, vector<16x128xf32>,
    return
  }
  func.func @transform_0(%arg0: i32) -> (i32, i32, i32) {
    %c0_i32 = arith.constant 0 : i32
    %c0_i32_0 = arith.constant 0 : i32
    %c0_i32_1 = arith.constant 0 : i32
    return %c0_i32, %arg0, %c0_i32_0 : i32, i32, i32
  }
  func.func @transform_1(%arg0: i32) -> (i32, i32) {
    %c0_i32 = arith.constant 0 : i32
    %c0_i32_0 = arith.constant 0 : i32
    %c0_i32_1 = arith.constant 0 : i32
    return %c0_i32, %c0_i32_0 : i32, i32
  }
  func.func @transform_2(%arg0: i32) -> (i32, i32) {
    %c0_i32 = arith.constant 0 : i32
    %c0_i32_0 = arith.constant 0 : i32
    %c0_i32_1 = arith.constant 0 : i32
    return %c0_i32, %c0_i32_0 : i32, i32
  }
  func.func @transform_3(%arg0: i32) -> (i32, i32) {
    %c0_i32 = arith.constant 0 : i32
    %c0_i32_0 = arith.constant 0 : i32
    %c0_i32_1 = arith.constant 0 : i32
    return %c0_i32, %c0_i32_0 : i32, i32
  }
  func.func @transform_4(%arg0: i32) -> (i32, i32) {
    %c0_i32 = arith.constant 0 : i32
    %c0_i32_0 = arith.constant 0 : i32
    %c0_i32_1 = arith.constant 0 : i32
    return %c0_i32, %c0_i32_0 : i32, i32
  }
  func.func @transform_5(%arg0: i32) -> (i32, i32) {
    %c0_i32 = arith.constant 0 : i32
    %c0_i32_0 = arith.constant 0 : i32
    %c0_i32_1 = arith.constant 0 : i32
    return %c0_i32, %c0_i32_0 : i32, i32
  }
  func.func @transform_6(%arg0: i32) -> (i32, i32) {
    %c0_i32 = arith.constant 0 : i32
    %c0_i32_0 = arith.constant 0 : i32
    %c0_i32_1 = arith.constant 0 : i32
    return %c0_i32, %c0_i32_0 : i32, i32
  }
  func.func @transform_7(%arg0: i32) -> (i32, i32) {
    %c0_i32 = arith.constant 0 : i32
    %c0_i32_0 = arith.constant 0 : i32
    %c0_i32_1 = arith.constant 0 : i32
    return %c0_i32, %c0_i32_0 : i32, i32
  }
  func.func @transform_8(%arg0: i32) -> (i32, i32) {
    %c0_i32 = arith.constant 0 : i32
    %c0_i32_0 = arith.constant 0 : i32
    %c0_i32_1 = arith.constant 0 : i32
    return %c0_i32, %c0_i32_0 : i32, i32
  }
  func.func @transform_9(%arg0: i32) -> (i32, i32) {
    %c0_i32 = arith.constant 0 : i32
    %c0_i32_0 = arith.constant 0 : i32
    return %arg0, %c0_i32 : i32, i32
  }
}

</mosaic_0001>

<llo_original>
// kernel: tpu_custom_call.1
$region0: #{tpu_custom_call.1}
  #allocation0 [shape = 'u32[]', space=smem, size = 0x4, offset = 0x4, fixed_abs, tag = 'smem constant byte address 0x4 - core index']
  #allocation1 [shape = 'u32[144,128]{1,0:T(1,128)}', space=vmem, size = 0x12000, scoped, tag = 'internal scratch']
  %s0 = inlined_call_operand.hbm [shape: bf16[8,16,128], index: 0, kind: input, shape index: {}]
  %s1 = inlined_call_operand.hbm [shape: bf16[384,256], index: 1, kind: input, shape index: {}]
  %s2 = inlined_call_operand.vmem [shape: f32[1,256], index: 2, kind: input, shape index: {}]
  %s3 = inlined_call_operand.hbm [shape: bf16[512,256], index: 3, kind: input, shape index: {}]
  %s4 = inlined_call_operand.vmem [shape: f32[1,256], index: 4, kind: input, shape index: {}]
  %s5 = inlined_call_operand.hbm [shape: bf16[256,128], index: 5, kind: input, shape index: {}]
  %s6 = inlined_call_operand.vmem [shape: f32[1,128], index: 6, kind: input, shape index: {}]
  %s7 = inlined_call_operand.hbm [shape: bf16[128,128], index: 7, kind: input, shape index: {}]
  %s8 = inlined_call_operand.vmem [shape: f32[1,128], index: 8, kind: input, shape index: {}]
  %s9 = inlined_call_operand.hbm [shape: f32[16,128], index: 9, kind: output, shape index: {}]
  %s10 = sld [smem:[#allocation0]]
  $region66: #{tpu_custom_call.1} parent=0
    _
  %s12 = ssub.s32 1, %s10
  %s13 = scalar_select 0, %s12, %s10
  $region1: #{tpu_custom_call.1} parent=0
    #allocation2 [shape = 'u8[32768]{0}', space=vmem, size = 0x8000, scoped, tag = 'input window, operand 0, single buffered']
    #allocation3 [shape = 's32[1]{0}', space=sflag, size = 0x4, scoped, tag = 'scoped memory for tpu_custom_call.1']
    #allocation4 [shape = 's32[1]{0}', space=sflag, size = 0x4, scoped, tag = 'scoped memory for tpu_custom_call.1']
    #allocation5 [shape = 'u8[196608]{0}', space=vmem, size = 0x30000, scoped, tag = 'input window, operand 1, single buffered']
    #allocation6 [shape = 's32[1]{0}', space=sflag, size = 0x4, scoped, tag = 'scoped memory for tpu_custom_call.1']
    #allocation7 [shape = 'u8[262144]{0}', space=vmem, size = 0x40000, scoped, tag = 'input window, operand 3, single buffered']
    #allocation8 [shape = 'u8[65536]{0}', space=vmem, size = 0x10000, scoped, tag = 'input window, operand 5, single buffered']
    #allocation9 [shape = 's32[1]{0}', space=sflag, size = 0x4, scoped, tag = 'scoped memory for tpu_custom_call.1']
    #allocation10 [shape = 'u8[32768]{0}', space=vmem, size = 0x8000, scoped, tag = 'input window, operand 7, single buffered']
    #allocation11 [shape = 'u8[8192]{0}', space=vmem, size = 0x2000, scoped, tag = 'output window, operand 0, single buffered']
    %14 = vsyncpa [#allocation3], 0
    %15 = vsyncpa [#allocation6], 0
    %16 = vsyncpa [#allocation9], 0
    %17 = vsyncpa [#allocation4], 0
    // Predicated region
    $region2: #{tpu_custom_call.1} parent=1 // pred_check
      _
    $region3: #{tpu_custom_call.1} parent=1 // pred_check_branch
      %19 = sbr.rel (0) target = $region5
    $region4: #{tpu_custom_call.1} parent=1 // pred_region
      %s21 = ssub.s32 1024, 1024
      %22 = vsyncadd [#allocation3], %s21
      %s23 = sshll.u32 [#allocation2], 4
      %s24 = int_to_ptr.vmem [resolvable:$true] %s23
      %29 = dma.hbm_to_vmem [thread:$0]  %s0, 1024, %s24, [#allocation3], 64, 64, 4
    $region5: #{tpu_custom_call.1} parent=1 // pred_fallthru
      _
    // Predicated region
    $region6: #{tpu_custom_call.1} parent=1 // pred_check
      _
    $region7: #{tpu_custom_call.1} parent=1 // pred_check_branch
      %31 = sbr.rel (0) target = $region9
    $region8: #{tpu_custom_call.1} parent=1 // pred_region
      %s33 = ssub.s32 6144, 6144
      %34 = vsyncadd [#allocation6], %s33
      %s35 = sshll.u32 [#allocation5], 4
      %s36 = int_to_ptr.vmem [resolvable:$true] %s35
      %41 = dma.hbm_to_vmem [thread:$0]  %s1, 6144, %s36, [#allocation6], 128, 128, 8
    $region9: #{tpu_custom_call.1} parent=1 // pred_fallthru
      _
    // Predicated region
    $region10: #{tpu_custom_call.1} parent=1 // pred_check
      _
    $region11: #{tpu_custom_call.1} parent=1 // pred_check_branch
      %43 = sbr.rel (0) target = $region13
    $region12: #{tpu_custom_call.1} parent=1 // pred_region
      _
    $region13: #{tpu_custom_call.1} parent=1 // pred_fallthru
      _
    // Predicated region
    $region14: #{tpu_custom_call.1} parent=1 // pred_check
      _
    $region15: #{tpu_custom_call.1} parent=1 // pred_check_branch
      %45 = sbr.rel (0) target = $region17
    $region16: #{tpu_custom_call.1} parent=1 // pred_region
      %s47 = ssub.s32 8192, 8192
      %48 = vsyncadd [#allocation6], %s47
      %s49 = sshll.u32 [#allocation7], 4
      %s50 = int_to_ptr.vmem [resolvable:$true] %s49
      %55 = dma.hbm_to_vmem [thread:$0]  %s3, 8192, %s50, [#allocation6], 128, 128, 8
    $region17: #{tpu_custom_call.1} parent=1 // pred_fallthru
      _
    // Predicated region
    $region18: #{tpu_custom_call.1} parent=1 // pred_check
      _
    $region19: #{tpu_custom_call.1} parent=1 // pred_check_branch
      %57 = sbr.rel (0) target = $region21
    $region20: #{tpu_custom_call.1} parent=1 // pred_region
      _
    $region21: #{tpu_custom_call.1} parent=1 // pred_fallthru
      _
    // Predicated region
    $region22: #{tpu_custom_call.1} parent=1 // pred_check
      _
    $region23: #{tpu_custom_call.1} parent=1 // pred_check_branch
      %59 = sbr.rel (0) target = $region25
    $region24: #{tpu_custom_call.1} parent=1 // pred_region
      %s61 = ssub.s32 2048, 2048
      %62 = vsyncadd [#allocation9], %s61
      %s63 = sshll.u32 [#allocation8], 4
      %s64 = int_to_ptr.vmem [resolvable:$true] %s63
      %69 = dma.hbm_to_vmem [thread:$0]  %s5, 2048, %s64, [#allocation9], 64, 64, 4
    $region25: #{tpu_custom_call.1} parent=1 // pred_fallthru
      _
    // Predicated region
    $region26: #{tpu_custom_call.1} parent=1 // pred_check
      _
    $region27: #{tpu_custom_call.1} parent=1 // pred_check_branch
      %71 = sbr.rel (0) target = $region29
    $region28: #{tpu_custom_call.1} parent=1 // pred_region
      _
    $region29: #{tpu_custom_call.1} parent=1 // pred_fallthru
      _
    // Predicated region
    $region30: #{tpu_custom_call.1} parent=1 // pred_check
      _
    $region31: #{tpu_custom_call.1} parent=1 // pred_check_branch
      %73 = sbr.rel (0) target = $region33
    $region32: #{tpu_custom_call.1} parent=1 // pred_region
      %s75 = ssub.s32 1024, 1024
      %76 = vsyncadd [#allocation9], %s75
      %s77 = sshll.u32 [#allocation10], 4
      %s78 = int_to_ptr.vmem [resolvable:$true] %s77
      %83 = dma.hbm_to_vmem [thread:$0]  %s7, 1024, %s78, [#allocation9], 64, 64, 4
    $region33: #{tpu_custom_call.1} parent=1 // pred_fallthru
      _
    // Predicated region
    $region34: #{tpu_custom_call.1} parent=1 // pred_check
      _
    $region35: #{tpu_custom_call.1} parent=1 // pred_check_branch
      %85 = sbr.rel (0) target = $region37
    $region36: #{tpu_custom_call.1} parent=1 // pred_region
      _
    $region37: #{tpu_custom_call.1} parent=1 // pred_fallthru
      _
    // Predicated region
    $region38: #{tpu_custom_call.1} parent=1 // pred_check
      _
    $region39: #{tpu_custom_call.1} parent=1 // pred_check_branch
      %87 = sbr.rel (0) target = $region41
    $region40: #{tpu_custom_call.1} parent=1 // pred_region
      %88 = dma.done [#allocation3], 1024
    $region41: #{tpu_custom_call.1} parent=1 // pred_fallthru
      _
    // Predicated region
    $region42: #{tpu_custom_call.1} parent=1 // pred_check
      _
    $region43: #{tpu_custom_call.1} parent=1 // pred_check_branch
      %90 = sbr.rel (0) target = $region45
    $region44: #{tpu_custom_call.1} parent=1 // pred_region
      %91 = dma.done [#allocation6], 6144
    $region45: #{tpu_custom_call.1} parent=1 // pred_fallthru
      _
    // Predicated region
    $region46: #{tpu_custom_call.1} parent=1 // pred_check
      _
    $region47: #{tpu_custom_call.1} parent=1 // pred_check_branch
      %93 = sbr.rel (0) target = $region49
    $region48: #{tpu_custom_call.1} parent=1 // pred_region
      %94 = dma.done [#allocation6], 8192
    $region49: #{tpu_custom_call.1} parent=1 // pred_fallthru
      _
    // Predicated region
    $region50: #{tpu_custom_call.1} parent=1 // pred_check
      _
    $region51: #{tpu_custom_call.1} parent=1 // pred_check_branch
      %96 = sbr.rel (0) target = $region53
    $region52: #{tpu_custom_call.1} parent=1 // pred_region
      %97 = dma.done [#allocation9], 2048
    $region53: #{tpu_custom_call.1} parent=1 // pred_fallthru
      _
    // Predicated region
    $region54: #{tpu_custom_call.1} parent=1 // pred_check
      _
    $region55: #{tpu_custom_call.1} parent=1 // pred_check_branch
      %99 = sbr.rel (0) target = $region57
    $region56: #{tpu_custom_call.1} parent=1 // pred_region
      %100 = dma.done [#allocation9], 1024
    $region57: #{tpu_custom_call.1} parent=1 // pred_fallthru
      _
    %v102 = vld [vmem:[#allocation5] sm:$0xff]
    %v103 = vld [vmem:[#allocation5 + $0x8] sm:$0xff]
    %v104 = vld [vmem:[#allocation5 + $0x10] sm:$0xff]
    %v105 = vld [vmem:[#allocation5 + $0x18] sm:$0xff]
    %v106 = vld [vmem:[#allocation5 + $0x20] sm:$0xff]
    %v107 = vld [vmem:[#allocation5 + $0x28] sm:$0xff]
    %v108 = vld [vmem:[#allocation5 + $0x30] sm:$0xff]
    %v109 = vld [vmem:[#allocation5 + $0x38] sm:$0xff]
    %v110 = vld [vmem:[#allocation5 + $0x40] sm:$0xff]
    %v111 = vld [vmem:[#allocation5 + $0x48] sm:$0xff]
    %v112 = vld [vmem:[#allocation5 + $0x50] sm:$0xff]
    %v113 = vld [vmem:[#allocation5 + $0x58] sm:$0xff]
    %v114 = vld [vmem:[#allocation5 + $0x60] sm:$0xff]
    %v115 = vld [vmem:[#allocation5 + $0x68] sm:$0xff]
    %v116 = vld [vmem:[#allocation5 + $0x70] sm:$0xff]
    %v117 = vld [vmem:[#allocation5 + $0x78] sm:$0xff]
    %v118 = vld [vmem:[#allocation5 + $0x80] sm:$0xff]
    %v119 = vld [vmem:[#allocation5 + $0x88] sm:$0xff]
    %v120 = vld [vmem:[#allocation5 + $0x90] sm:$0xff]
    %v121 = vld [vmem:[#allocation5 + $0x98] sm:$0xff]
    %v122 = vld [vmem:[#allocation5 + $0xa0] sm:$0xff]
    %v123 = vld [vmem:[#allocation5 + $0xa8] sm:$0xff]
    %v124 = vld [vmem:[#allocation5 + $0xb0] sm:$0xff]
    %v125 = vld [vmem:[#allocation5 + $0xb8] sm:$0xff]
    %v126 = vld [vmem:[#allocation5 + $0xc0] sm:$0xff]
    %v127 = vld [vmem:[#allocation5 + $0xc8] sm:$0xff]
    %v128 = vld [vmem:[#allocation5 + $0xd0] sm:$0xff]
    %v129 = vld [vmem:[#allocation5 + $0xd8] sm:$0xff]
    %v130 = vld [vmem:[#allocation5 + $0xe0] sm:$0xff]
    %v131 = vld [vmem:[#allocation5 + $0xe8] sm:$0xff]
    %v132 = vld [vmem:[#allocation5 + $0xf0] sm:$0xff]
    %v133 = vld [vmem:[#allocation5 + $0xf8] sm:$0xff]
    %v134 = vld [vmem:[#allocation5 + $0x100] sm:$0xff]
    %v135 = vld [vmem:[#allocation5 + $0x108] sm:$0xff]
    %v136 = vld [vmem:[#allocation5 + $0x110] sm:$0xff]
    %v137 = vld [vmem:[#allocation5 + $0x118] sm:$0xff]
    %v138 = vld [vmem:[#allocation5 + $0x120] sm:$0xff]
    %v139 = vld [vmem:[#allocation5 + $0x128] sm:$0xff]
    %v140 = vld [vmem:[#allocation5 + $0x130] sm:$0xff]
    %v141 = vld [vmem:[#allocation5 + $0x138] sm:$0xff]
    %v142 = vld [vmem:[#allocation5 + $0x140] sm:$0xff]
    %v143 = vld [vmem:[#allocation5 + $0x148] sm:$0xff]
    %v144 = vld [vmem:[#allocation5 + $0x150] sm:$0xff]
    %v145 = vld [vmem:[#allocation5 + $0x158] sm:$0xff]
    %v146 = vld [vmem:[#allocation5 + $0x160] sm:$0xff]
    %v147 = vld [vmem:[#allocation5 + $0x168] sm:$0xff]
    %v148 = vld [vmem:[#allocation5 + $0x170] sm:$0xff]
    %v149 = vld [vmem:[#allocation5 + $0x178] sm:$0xff]
    %v150 = vld [vmem:[#allocation7] sm:$0xff]
    %v151 = vld [vmem:[#allocation7 + $0x8] sm:$0xff]
    %v152 = vld [vmem:[#allocation7 + $0x10] sm:$0xff]
    %v153 = vld [vmem:[#allocation7 + $0x18] sm:$0xff]
    %v154 = vld [vmem:[#allocation7 + $0x20] sm:$0xff]
    %v155 = vld [vmem:[#allocation7 + $0x28] sm:$0xff]
    %v156 = vld [vmem:[#allocation7 + $0x30] sm:$0xff]
    %v157 = vld [vmem:[#allocation7 + $0x38] sm:$0xff]
    %v158 = vld [vmem:[#allocation7 + $0x40] sm:$0xff]
    %v159 = vld [vmem:[#allocation7 + $0x48] sm:$0xff]
    %v160 = vld [vmem:[#allocation7 + $0x50] sm:$0xff]
    %v161 = vld [vmem:[#allocation7 + $0x58] sm:$0xff]
    %v162 = vld [vmem:[#allocation7 + $0x60] sm:$0xff]
    %v163 = vld [vmem:[#allocation7 + $0x68] sm:$0xff]
    %v164 = vld [vmem:[#allocation7 + $0x70] sm:$0xff]
    %v165 = vld [vmem:[#allocation7 + $0x78] sm:$0xff]
    %v166 = vld [vmem:[#allocation7 + $0x80] sm:$0xff]
    %v167 = vld [vmem:[#allocation7 + $0x88] sm:$0xff]
    %v168 = vld [vmem:[#allocation7 + $0x90] sm:$0xff]
    %v169 = vld [vmem:[#allocation7 + $0x98] sm:$0xff]
    %v170 = vld [vmem:[#allocation7 + $0xa0] sm:$0xff]
    %v171 = vld [vmem:[#allocation7 + $0xa8] sm:$0xff]
    %v172 = vld [vmem:[#allocation7 + $0xb0] sm:$0xff]
    %v173 = vld [vmem:[#allocation7 + $0xb8] sm:$0xff]
    %v174 = vld [vmem:[#allocation7 + $0xc0] sm:$0xff]
    %v175 = vld [vmem:[#allocation7 + $0xc8] sm:$0xff]
    %v176 = vld [vmem:[#allocation7 + $0xd0] sm:$0xff]
    %v177 = vld [vmem:[#allocation7 + $0xd8] sm:$0xff]
    %v178 = vld [vmem:[#allocation7 + $0xe0] sm:$0xff]
    %v179 = vld [vmem:[#allocation7 + $0xe8] sm:$0xff]
    %v180 = vld [vmem:[#allocation7 + $0xf0] sm:$0xff]
    %v181 = vld [vmem:[#allocation7 + $0xf8] sm:$0xff]
    %v182 = vld [vmem:[#allocation7 + $0x100] sm:$0xff]
    %v183 = vld [vmem:[#allocation7 + $0x108] sm:$0xff]
    %v184 = vld [vmem:[#allocation7 + $0x110] sm:$0xff]
    %v185 = vld [vmem:[#allocation7 + $0x118] sm:$0xff]
    %v186 = vld [vmem:[#allocation7 + $0x120] sm:$0xff]
    %v187 = vld [vmem:[#allocation7 + $0x128] sm:$0xff]
    %v188 = vld [vmem:[#allocation7 + $0x130] sm:$0xff]
    %v189 = vld [vmem:[#allocation7 + $0x138] sm:$0xff]
    %v190 = vld [vmem:[#allocation7 + $0x140] sm:$0xff]
    %v191 = vld [vmem:[#allocation7 + $0x148] sm:$0xff]
    %v192 = vld [vmem:[#allocation7 + $0x150] sm:$0xff]
    %v193 = vld [vmem:[#allocation7 + $0x158] sm:$0xff]
    %v194 = vld [vmem:[#allocation7 + $0x160] sm:$0xff]
    %v195 = vld [vmem:[#allocation7 + $0x168] sm:$0xff]
    %v196 = vld [vmem:[#allocation7 + $0x170] sm:$0xff]
    %v197 = vld [vmem:[#allocation7 + $0x178] sm:$0xff]
    %v198 = vld [vmem:[#allocation7 + $0x180] sm:$0xff]
    %v199 = vld [vmem:[#allocation7 + $0x188] sm:$0xff]
    %v200 = vld [vmem:[#allocation7 + $0x190] sm:$0xff]
    %v201 = vld [vmem:[#allocation7 + $0x198] sm:$0xff]
    %v202 = vld [vmem:[#allocation7 + $0x1a0] sm:$0xff]
    %v203 = vld [vmem:[#allocation7 + $0x1a8] sm:$0xff]
    %v204 = vld [vmem:[#allocation7 + $0x1b0] sm:$0xff]
    %v205 = vld [vmem:[#allocation7 + $0x1b8] sm:$0xff]
    %v206 = vld [vmem:[#allocation7 + $0x1c0] sm:$0xff]
    %v207 = vld [vmem:[#allocation7 + $0x1c8] sm:$0xff]
    %v208 = vld [vmem:[#allocation7 + $0x1d0] sm:$0xff]
    %v209 = vld [vmem:[#allocation7 + $0x1d8] sm:$0xff]
    %v210 = vld [vmem:[#allocation7 + $0x1e0] sm:$0xff]
    %v211 = vld [vmem:[#allocation7 + $0x1e8] sm:$0xff]
    %v212 = vld [vmem:[#allocation7 + $0x1f0] sm:$0xff]
    %v213 = vld [vmem:[#allocation7 + $0x1f8] sm:$0xff]
    %v214 = vld [vmem:[%s2] sm:$0x3]
    %v216 = vlaneseq
    %v217 = vshrl.u32 %v216, 7
    %v218 = vsub.s32 0, %v217
    %v219 = vrot.slane %v214, %v218
    %v220 = vlaneseq
    %v221 = vshrl.u32 %v220, 7
    %v222 = vsub.s32 1, %v221
    %v223 = vrot.slane %v214, %v222
    %v226 = vld [vmem:[%s4] sm:$0x3]
    %v228 = vlaneseq
    %v229 = vshrl.u32 %v228, 7
    %v230 = vsub.s32 0, %v229
    %v231 = vrot.slane %v226, %v230
    %v232 = vlaneseq
    %v233 = vshrl.u32 %v232, 7
    %v234 = vsub.s32 1, %v233
    %v235 = vrot.slane %v226, %v234
    %v238 = vld [vmem:[#allocation2] sm:$0xf]
    %v239 = vld [vmem:[#allocation2 + $0x4] sm:$0xf]
    %v242 = vunpack.c.l.b16 %v238
    %v243 = vunpack.c.l.b16 %v239
    %v244 = vpack.c.b16 %v243, %v242
    %v294 = vunpack.c.l.b16 %v102
    %v295 = vunpack.c.h.b16 %v102
    %v296 = vunpack.c.l.b16 %v103
    %v297 = vunpack.c.h.b16 %v103
    %v298 = vunpack.c.l.b16 %v104
    %v299 = vunpack.c.h.b16 %v104
    %v300 = vunpack.c.l.b16 %v105
    %v301 = vunpack.c.h.b16 %v105
    %v302 = vunpack.c.l.b16 %v106
    %v303 = vunpack.c.h.b16 %v106
    %v304 = vunpack.c.l.b16 %v107
    %v305 = vunpack.c.h.b16 %v107
    %v306 = vunpack.c.l.b16 %v108
    %v307 = vunpack.c.h.b16 %v108
    %v308 = vunpack.c.l.b16 %v109
    %v309 = vunpack.c.h.b16 %v109
    %v310 = vunpack.c.l.b16 %v110
    %v311 = vunpack.c.h.b16 %v110
    %v312 = vunpack.c.l.b16 %v111
    %v313 = vunpack.c.h.b16 %v111
    %v314 = vunpack.c.l.b16 %v112
    %v315 = vunpack.c.h.b16 %v112
    %v316 = vunpack.c.l.b16 %v113
    %v317 = vunpack.c.h.b16 %v113
    %v318 = vunpack.c.l.b16 %v114
    %v319 = vunpack.c.h.b16 %v114
    %v320 = vunpack.c.l.b16 %v115
    %v321 = vunpack.c.h.b16 %v115
    %v322 = vunpack.c.l.b16 %v116
    %v323 = vunpack.c.h.b16 %v116
    %v324 = vunpack.c.l.b16 %v117
    %v325 = vunpack.c.h.b16 %v117
    %v326 = vunpack.c.l.b16 %v118
    %v327 = vunpack.c.h.b16 %v118
    %v328 = vunpack.c.l.b16 %v119
    %v329 = vunpack.c.h.b16 %v119
    %v330 = vunpack.c.l.b16 %v120
    %v331 = vunpack.c.h.b16 %v120
    %v332 = vunpack.c.l.b16 %v121
    %v333 = vunpack.c.h.b16 %v121
    %v334 = vunpack.c.l.b16 %v122
    %v335 = vunpack.c.h.b16 %v122
    %v336 = vunpack.c.l.b16 %v123
    %v337 = vunpack.c.h.b16 %v123
    %v338 = vunpack.c.l.b16 %v124
    %v339 = vunpack.c.h.b16 %v124
    %v340 = vunpack.c.l.b16 %v125
    %v341 = vunpack.c.h.b16 %v125
    %v342 = vunpack.c.l.b16 %v126
    %v343 = vunpack.c.h.b16 %v126
    %v344 = vunpack.c.l.b16 %v127
    %v345 = vunpack.c.h.b16 %v127
    %v346 = vunpack.c.l.b16 %v128
    %v347 = vunpack.c.h.b16 %v128
    %v348 = vunpack.c.l.b16 %v129
    %v349 = vunpack.c.h.b16 %v129
    %v350 = vunpack.c.l.b16 %v130
    %v351 = vunpack.c.h.b16 %v130
    %v352 = vunpack.c.l.b16 %v131
    %v353 = vunpack.c.h.b16 %v131
    %v354 = vunpack.c.l.b16 %v132
    %v355 = vunpack.c.h.b16 %v132
    %v356 = vunpack.c.l.b16 %v133
    %v357 = vunpack.c.h.b16 %v133
    %v358 = vunpack.c.l.b16 %v134
    %v359 = vunpack.c.h.b16 %v134
    %v360 = vunpack.c.l.b16 %v135
    %v361 = vunpack.c.h.b16 %v135
    %v362 = vunpack.c.l.b16 %v136
    %v363 = vunpack.c.h.b16 %v136
    %v364 = vunpack.c.l.b16 %v137
    %v365 = vunpack.c.h.b16 %v137
    %v366 = vunpack.c.l.b16 %v138
    %v367 = vunpack.c.h.b16 %v138
    %v368 = vunpack.c.l.b16 %v139
    %v369 = vunpack.c.h.b16 %v139
    %v370 = vunpack.c.l.b16 %v140
    %v371 = vunpack.c.h.b16 %v140
    %v372 = vunpack.c.l.b16 %v141
    %v373 = vunpack.c.h.b16 %v141
    %v374 = vunpack.c.l.b16 %v142
    %v375 = vunpack.c.h.b16 %v142
    %v376 = vunpack.c.l.b16 %v143
    %v377 = vunpack.c.h.b16 %v143
    %v378 = vunpack.c.l.b16 %v144
    %v379 = vunpack.c.h.b16 %v144
    %v380 = vunpack.c.l.b16 %v145
    %v381 = vunpack.c.h.b16 %v145
    %v382 = vunpack.c.l.b16 %v146
    %v383 = vunpack.c.h.b16 %v146
    %v384 = vunpack.c.l.b16 %v147
    %v385 = vunpack.c.h.b16 %v147
    %v386 = vunpack.c.l.b16 %v148
    %v387 = vunpack.c.h.b16 %v148
    %v388 = vunpack.c.l.b16 %v149
    %v389 = vunpack.c.h.b16 %v149
    %v390 = vpack.c.b16 %v296, %v294
    %v391 = vpack.c.b16 %v297, %v295
    %v392 = vpack.c.b16 %v300, %v298
    %v393 = vpack.c.b16 %v301, %v299
    %v394 = vpack.c.b16 %v304, %v302
    %v395 = vpack.c.b16 %v305, %v303
    %v396 = vpack.c.b16 %v308, %v306
    %v397 = vpack.c.b16 %v309, %v307
    %v398 = vpack.c.b16 %v312, %v310
    %v399 = vpack.c.b16 %v313, %v311
    %v400 = vpack.c.b16 %v316, %v314
    %v401 = vpack.c.b16 %v317, %v315
    %v402 = vpack.c.b16 %v320, %v318
    %v403 = vpack.c.b16 %v321, %v319
    %v404 = vpack.c.b16 %v324, %v322
    %v405 = vpack.c.b16 %v325, %v323
    %v406 = vpack.c.b16 %v328, %v326
    %v407 = vpack.c.b16 %v329, %v327
    %v408 = vpack.c.b16 %v332, %v330
    %v409 = vpack.c.b16 %v333, %v331
    %v410 = vpack.c.b16 %v336, %v334
    %v411 = vpack.c.b16 %v337, %v335
    %v412 = vpack.c.b16 %v340, %v338
    %v413 = vpack.c.b16 %v341, %v339
    %v414 = vpack.c.b16 %v344, %v342
    %v415 = vpack.c.b16 %v345, %v343
    %v416 = vpack.c.b16 %v348, %v346
    %v417 = vpack.c.b16 %v349, %v347
    %v418 = vpack.c.b16 %v352, %v350
    %v419 = vpack.c.b16 %v353, %v351
    %v420 = vpack.c.b16 %v356, %v354
    %v421 = vpack.c.b16 %v357, %v355
    %v422 = vpack.c.b16 %v360, %v358
    %v423 = vpack.c.b16 %v361, %v359
    %v424 = vpack.c.b16 %v364, %v362
    %v425 = vpack.c.b16 %v365, %v363
    %v426 = vpack.c.b16 %v368, %v366
    %v427 = vpack.c.b16 %v369, %v367
    %v428 = vpack.c.b16 %v372, %v370
    %v429 = vpack.c.b16 %v373, %v371
    %v430 = vpack.c.b16 %v376, %v374
    %v431 = vpack.c.b16 %v377, %v375
    %v432 = vpack.c.b16 %v380, %v378
    %v433 = vpack.c.b16 %v381, %v379
    %v434 = vpack.c.b16 %v384, %v382
    %v435 = vpack.c.b16 %v385, %v383
    %v436 = vpack.c.b16 %v388, %v386
    %v437 = vpack.c.b16 %v389, %v387
    %486 = vmatprep.subr.bf16.mxu0 %v405
    %487 = vmatpush1.bf16.msra.mxu0 %v404
    %488 = vmatprep.subr.bf16.mxu0 %v403
    %489 = vmatpush1.bf16.msra.mxu0 %v402
    %490 = vmatprep.subr.bf16.mxu0 %v401
    %491 = vmatpush1.bf16.msra.mxu0 %v400
    %492 = vmatprep.subr.bf16.mxu0 %v399
    %493 = vmatpush1.bf16.msra.mxu0 %v398
    %494 = vmatprep.subr.bf16.mxu0 %v397
    %495 = vmatpush1.bf16.msra.mxu0 %v396
    %496 = vmatprep.subr.bf16.mxu0 %v395
    %497 = vmatpush1.bf16.msra.mxu0 %v394
    %498 = vmatprep.subr.bf16.mxu0 %v393
    %499 = vmatpush1.bf16.msra.mxu0 %v392
    %500 = vmatprep.subr.bf16.mxu0 %v391
    %501 = vmatpush1.bf16.msra.mxu0 %v390
    %502 = vmatprep.subr.bf16.mxu0 %v421
    %503 = vmatpush2.bf16.msra.mxu0 %v420
    %504 = vmatprep.subr.bf16.mxu0 %v419
    %505 = vmatpush2.bf16.msra.mxu0 %v418
    %506 = vmatprep.subr.bf16.mxu0 %v417
    %507 = vmatpush2.bf16.msra.mxu0 %v416
    %508 = vmatprep.subr.bf16.mxu0 %v415
    %509 = vmatpush2.bf16.msra.mxu0 %v414
    %510 = vmatprep.subr.bf16.mxu0 %v413
    %511 = vmatpush2.bf16.msra.mxu0 %v412
    %512 = vmatprep.subr.bf16.mxu0 %v411
    %513 = vmatpush2.bf16.msra.mxu0 %v410
    %514 = vmatprep.subr.bf16.mxu0 %v409
    %515 = vmatpush2.bf16.msra.mxu0 %v408
    %516 = vmatprep.subr.bf16.mxu0 %v407
    %517 = vmatpush2.bf16.msra.mxu0 %v406
    %518 = vmatprep.mubr.bf16.mxu0 0
    %519 = vmatmul.mubr.bf16.gmra.mxu0 %v244
    %v520 = vpop.f32.mrf.mxu0
    %v521 = vadd.f32 %v219, %v520
    %v522 = vpop.f32.mrf.mxu0
    %v523 = vadd.f32 %v223, %v522
    %v524 = vpop.f32.mrf.mxu0
    %v525 = vadd.f32 %v219, %v524
    %v526 = vpop.f32.mrf.mxu0
    %v527 = vadd.f32 %v223, %v526
    %528 = vdwg.mxu0
    %529 = vmatprep.subr.bf16.mxu0 %v437
    %530 = vmatpush1.bf16.msra.mxu0 %v436
    %531 = vmatprep.subr.bf16.mxu0 %v435
    %532 = vmatpush1.bf16.msra.mxu0 %v434
    %533 = vmatprep.subr.bf16.mxu0 %v433
    %534 = vmatpush1.bf16.msra.mxu0 %v432
    %535 = vmatprep.subr.bf16.mxu0 %v431
    %536 = vmatpush1.bf16.msra.mxu0 %v430
    %537 = vmatprep.subr.bf16.mxu0 %v429
    %538 = vmatpush1.bf16.msra.mxu0 %v428
    %539 = vmatprep.subr.bf16.mxu0 %v427
    %540 = vmatpush1.bf16.msra.mxu0 %v426
    %541 = vmatprep.subr.bf16.mxu0 %v425
    %542 = vmatpush1.bf16.msra.mxu0 %v424
    %543 = vmatprep.subr.bf16.mxu0 %v423
    %544 = vmatpush1.bf16.msra.mxu0 %v422
    %545 = vmatprep.subr.bf16.mxu0 0
    %546 = vmatpush2.bf16.msra.mxu0 0
    %547 = vmatprep.subr.bf16.mxu0 0
    %548 = vmatpush2.bf16.msra.mxu0 0
    %549 = vmatprep.subr.bf16.mxu0 0
    %550 = vmatpush2.bf16.msra.mxu0 0
    %551 = vmatprep.subr.bf16.mxu0 0
    %552 = vmatpush2.bf16.msra.mxu0 0
    %553 = vmatprep.subr.bf16.mxu0 0
    %554 = vmatpush2.bf16.msra.mxu0 0
    %555 = vmatprep.subr.bf16.mxu0 0
    %556 = vmatpush2.bf16.msra.mxu0 0
    %557 = vmatprep.subr.bf16.mxu0 0
    %558 = vmatpush2.bf16.msra.mxu0 0
    %559 = vmatprep.subr.bf16.mxu0 0
    %560 = vmatpush2.bf16.msra.mxu0 0
    %561 = vmatprep.mubr.bf16.mxu0 0
    %562 = vmatmul.mubr.bf16.gmra.mxu0 0
    %v563 = vpop.f32.mrf.mxu0
    %v564 = vadd.f32 %v521, %v563
    %v565 = vpop.f32.mrf.mxu0
    %v566 = vadd.f32 %v523, %v565
    %v567 = vpop.f32.mrf.mxu0
    %v568 = vadd.f32 %v525, %v567
    %v569 = vpop.f32.mrf.mxu0
    %v570 = vadd.f32 %v527, %v569
    %571 = vdwg.mxu0
    %v572 = vtanh.pop %v564
    %v573 = vtanh.pop %v566
    %v574 = vtanh.pop %v568
    %v575 = vtanh.pop %v570
    %v576 = vpack.c.bf16 %v574, %v572
    %v577 = vpack.c.bf16 %v575, %v573
    %v642 = vunpack.c.l.b16 %v150
    %v643 = vunpack.c.h.b16 %v150
    %v644 = vunpack.c.l.b16 %v151
    %v645 = vunpack.c.h.b16 %v151
    %v646 = vunpack.c.l.b16 %v152
    %v647 = vunpack.c.h.b16 %v152
    %v648 = vunpack.c.l.b16 %v153
    %v649 = vunpack.c.h.b16 %v153
    %v650 = vunpack.c.l.b16 %v154
    %v651 = vunpack.c.h.b16 %v154
    %v652 = vunpack.c.l.b16 %v155
    %v653 = vunpack.c.h.b16 %v155
    %v654 = vunpack.c.l.b16 %v156
    %v655 = vunpack.c.h.b16 %v156
    %v656 = vunpack.c.l.b16 %v157
    %v657 = vunpack.c.h.b16 %v157
    %v658 = vunpack.c.l.b16 %v158
    %v659 = vunpack.c.h.b16 %v158
    %v660 = vunpack.c.l.b16 %v159
    %v661 = vunpack.c.h.b16 %v159
    %v662 = vunpack.c.l.b16 %v160
    %v663 = vunpack.c.h.b16 %v160
    %v664 = vunpack.c.l.b16 %v161
    %v665 = vunpack.c.h.b16 %v161
    %v666 = vunpack.c.l.b16 %v162
    %v667 = vunpack.c.h.b16 %v162
    %v668 = vunpack.c.l.b16 %v163
    %v669 = vunpack.c.h.b16 %v163
    %v670 = vunpack.c.l.b16 %v164
    %v671 = vunpack.c.h.b16 %v164
    %v672 = vunpack.c.l.b16 %v165
    %v673 = vunpack.c.h.b16 %v165
    %v674 = vunpack.c.l.b16 %v166
    %v675 = vunpack.c.h.b16 %v166
    %v676 = vunpack.c.l.b16 %v167
    %v677 = vunpack.c.h.b16 %v167
    %v678 = vunpack.c.l.b16 %v168
    %v679 = vunpack.c.h.b16 %v168
    %v680 = vunpack.c.l.b16 %v169
    %v681 = vunpack.c.h.b16 %v169
    %v682 = vunpack.c.l.b16 %v170
    %v683 = vunpack.c.h.b16 %v170
    %v684 = vunpack.c.l.b16 %v171
    %v685 = vunpack.c.h.b16 %v171
    %v686 = vunpack.c.l.b16 %v172
    %v687 = vunpack.c.h.b16 %v172
    %v688 = vunpack.c.l.b16 %v173
    %v689 = vunpack.c.h.b16 %v173
    %v690 = vunpack.c.l.b16 %v174
    %v691 = vunpack.c.h.b16 %v174
    %v692 = vunpack.c.l.b16 %v175
    %v693 = vunpack.c.h.b16 %v175
    %v694 = vunpack.c.l.b16 %v176
    %v695 = vunpack.c.h.b16 %v176
    %v696 = vunpack.c.l.b16 %v177
    %v697 = vunpack.c.h.b16 %v177
    %v698 = vunpack.c.l.b16 %v178
    %v699 = vunpack.c.h.b16 %v178
    %v700 = vunpack.c.l.b16 %v179
    %v701 = vunpack.c.h.b16 %v179
    %v702 = vunpack.c.l.b16 %v180
    %v703 = vunpack.c.h.b16 %v180
    %v704 = vunpack.c.l.b16 %v181
    %v705 = vunpack.c.h.b16 %v181
    %v706 = vunpack.c.l.b16 %v182
    %v707 = vunpack.c.h.b16 %v182
    %v708 = vunpack.c.l.b16 %v183
    %v709 = vunpack.c.h.b16 %v183
    %v710 = vunpack.c.l.b16 %v184
    %v711 = vunpack.c.h.b16 %v184
    %v712 = vunpack.c.l.b16 %v185
    %v713 = vunpack.c.h.b16 %v185
    %v714 = vunpack.c.l.b16 %v186
    %v715 = vunpack.c.h.b16 %v186
    %v716 = vunpack.c.l.b16 %v187
    %v717 = vunpack.c.h.b16 %v187
    %v718 = vunpack.c.l.b16 %v188
    %v719 = vunpack.c.h.b16 %v188
    %v720 = vunpack.c.l.b16 %v189
    %v721 = vunpack.c.h.b16 %v189
    %v722 = vunpack.c.l.b16 %v190
    %v723 = vunpack.c.h.b16 %v190
    %v724 = vunpack.c.l.b16 %v191
    %v725 = vunpack.c.h.b16 %v191
    %v726 = vunpack.c.l.b16 %v192
    %v727 = vunpack.c.h.b16 %v192
    %v728 = vunpack.c.l.b16 %v193
    %v729 = vunpack.c.h.b16 %v193
    %v730 = vunpack.c.l.b16 %v194
    %v731 = vunpack.c.h.b16 %v194
    %v732 = vunpack.c.l.b16 %v195
    %v733 = vunpack.c.h.b16 %v195
    %v734 = vunpack.c.l.b16 %v196
    %v735 = vunpack.c.h.b16 %v196
    %v736 = vunpack.c.l.b16 %v197
    %v737 = vunpack.c.h.b16 %v197
    %v738 = vunpack.c.l.b16 %v198
    %v739 = vunpack.c.h.b16 %v198
    %v740 = vunpack.c.l.b16 %v199
    %v741 = vunpack.c.h.b16 %v199
    %v742 = vunpack.c.l.b16 %v200
    %v743 = vunpack.c.h.b16 %v200
    %v744 = vunpack.c.l.b16 %v201
    %v745 = vunpack.c.h.b16 %v201
    %v746 = vunpack.c.l.b16 %v202
    %v747 = vunpack.c.h.b16 %v202
    %v748 = vunpack.c.l.b16 %v203
    %v749 = vunpack.c.h.b16 %v203
    %v750 = vunpack.c.l.b16 %v204
    %v751 = vunpack.c.h.b16 %v204
    %v752 = vunpack.c.l.b16 %v205
    %v753 = vunpack.c.h.b16 %v205
    %v754 = vunpack.c.l.b16 %v206
    %v755 = vunpack.c.h.b16 %v206
    %v756 = vunpack.c.l.b16 %v207
    %v757 = vunpack.c.h.b16 %v207
    %v758 = vunpack.c.l.b16 %v208
    %v759 = vunpack.c.h.b16 %v208
    %v760 = vunpack.c.l.b16 %v209
    %v761 = vunpack.c.h.b16 %v209
    %v762 = vunpack.c.l.b16 %v210
    %v763 = vunpack.c.h.b16 %v210
    %v764 = vunpack.c.l.b16 %v211
    %v765 = vunpack.c.h.b16 %v211
    %v766 = vunpack.c.l.b16 %v212
    %v767 = vunpack.c.h.b16 %v212
    %v768 = vunpack.c.l.b16 %v213
    %v769 = vunpack.c.h.b16 %v213
    %v770 = vpack.c.b16 %v644, %v642
    %v771 = vpack.c.b16 %v645, %v643
    %v772 = vpack.c.b16 %v648, %v646
    %v773 = vpack.c.b16 %v649, %v647
    %v774 = vpack.c.b16 %v652, %v650
    %v775 = vpack.c.b16 %v653, %v651
    %v776 = vpack.c.b16 %v656, %v654
    %v777 = vpack.c.b16 %v657, %v655
    %v778 = vpack.c.b16 %v660, %v658
    %v779 = vpack.c.b16 %v661, %v659
    %v780 = vpack.c.b16 %v664, %v662
    %v781 = vpack.c.b16 %v665, %v663
    %v782 = vpack.c.b16 %v668, %v666
    %v783 = vpack.c.b16 %v669, %v667
    %v784 = vpack.c.b16 %v672, %v670
    %v785 = vpack.c.b16 %v673, %v671
    %v786 = vpack.c.b16 %v676, %v674
    %v787 = vpack.c.b16 %v677, %v675
    %v788 = vpack.c.b16 %v680, %v678
    %v789 = vpack.c.b16 %v681, %v679
    %v790 = vpack.c.b16 %v684, %v682
    %v791 = vpack.c.b16 %v685, %v683
    %v792 = vpack.c.b16 %v688, %v686
    %v793 = vpack.c.b16 %v689, %v687
    %v794 = vpack.c.b16 %v692, %v690
    %v795 = vpack.c.b16 %v693, %v691
    %v796 = vpack.c.b16 %v696, %v694
    %v797 = vpack.c.b16 %v697, %v695
    %v798 = vpack.c.b16 %v700, %v698
    %v799 = vpack.c.b16 %v701, %v699
    %v800 = vpack.c.b16 %v704, %v702
    %v801 = vpack.c.b16 %v705, %v703
    %v802 = vpack.c.b16 %v708, %v706
    %v803 = vpack.c.b16 %v709, %v707
    %v804 = vpack.c.b16 %v712, %v710
    %v805 = vpack.c.b16 %v713, %v711
    %v806 = vpack.c.b16 %v716, %v714
    %v807 = vpack.c.b16 %v717, %v715
    %v808 = vpack.c.b16 %v720, %v718
    %v809 = vpack.c.b16 %v721, %v719
    %v810 = vpack.c.b16 %v724, %v722
    %v811 = vpack.c.b16 %v725, %v723
    %v812 = vpack.c.b16 %v728, %v726
    %v813 = vpack.c.b16 %v729, %v727
    %v814 = vpack.c.b16 %v732, %v730
    %v815 = vpack.c.b16 %v733, %v731
    %v816 = vpack.c.b16 %v736, %v734
    %v817 = vpack.c.b16 %v737, %v735
    %v818 = vpack.c.b16 %v740, %v738
    %v819 = vpack.c.b16 %v741, %v739
    %v820 = vpack.c.b16 %v744, %v742
    %v821 = vpack.c.b16 %v745, %v743
    %v822 = vpack.c.b16 %v748, %v746
    %v823 = vpack.c.b16 %v749, %v747
    %v824 = vpack.c.b16 %v752, %v750
    %v825 = vpack.c.b16 %v753, %v751
    %v826 = vpack.c.b16 %v756, %v754
    %v827 = vpack.c.b16 %v757, %v755
    %v828 = vpack.c.b16 %v760, %v758
    %v829 = vpack.c.b16 %v761, %v759
    %v830 = vpack.c.b16 %v764, %v762
    %v831 = vpack.c.b16 %v765, %v763
    %v832 = vpack.c.b16 %v768, %v766
    %v833 = vpack.c.b16 %v769, %v767
    %898 = vmatprep.subr.bf16.mxu0 %v785
    %899 = vmatpush1.bf16.msra.mxu0 %v784
    %900 = vmatprep.subr.bf16.mxu0 %v783
    %901 = vmatpush1.bf16.msra.mxu0 %v782
    %902 = vmatprep.subr.bf16.mxu0 %v781
    %903 = vmatpush1.bf16.msra.mxu0 %v780
    %904 = vmatprep.subr.bf16.mxu0 %v779
    %905 = vmatpush1.bf16.msra.mxu0 %v778
    %906 = vmatprep.subr.bf16.mxu0 %v777
    %907 = vmatpush1.bf16.msra.mxu0 %v776
    %908 = vmatprep.subr.bf16.mxu0 %v775
    %909 = vmatpush1.bf16.msra.mxu0 %v774
    %910 = vmatprep.subr.bf16.mxu0 %v773
    %911 = vmatpush1.bf16.msra.mxu0 %v772
    %912 = vmatprep.subr.bf16.mxu0 %v771
    %913 = vmatpush1.bf16.msra.mxu0 %v770
    %914 = vmatprep.subr.bf16.mxu0 %v801
    %915 = vmatpush2.bf16.msra.mxu0 %v800
    %916 = vmatprep.subr.bf16.mxu0 %v799
    %917 = vmatpush2.bf16.msra.mxu0 %v798
    %918 = vmatprep.subr.bf16.mxu0 %v797
    %919 = vmatpush2.bf16.msra.mxu0 %v796
    %920 = vmatprep.subr.bf16.mxu0 %v795
    %921 = vmatpush2.bf16.msra.mxu0 %v794
    %922 = vmatprep.subr.bf16.mxu0 %v793
    %923 = vmatpush2.bf16.msra.mxu0 %v792
    %924 = vmatprep.subr.bf16.mxu0 %v791
    %925 = vmatpush2.bf16.msra.mxu0 %v790
    %926 = vmatprep.subr.bf16.mxu0 %v789
    %927 = vmatpush2.bf16.msra.mxu0 %v788
    %928 = vmatprep.subr.bf16.mxu0 %v787
    %929 = vmatpush2.bf16.msra.mxu0 %v786
    %930 = vmatprep.mubr.bf16.mxu0 %v577
    %931 = vmatmul.mubr.bf16.gmra.mxu0 %v576
    %v932 = vpop.f32.mrf.mxu0
    %v933 = vadd.f32 %v231, %v932
    %v934 = vpop.f32.mrf.mxu0
    %v935 = vadd.f32 %v235, %v934
    %v936 = vpop.f32.mrf.mxu0
    %v937 = vadd.f32 %v231, %v936
    %v938 = vpop.f32.mrf.mxu0
    %v939 = vadd.f32 %v235, %v938
    %940 = vdwg.mxu0
    %941 = vmatprep.subr.bf16.mxu0 %v817
    %942 = vmatpush1.bf16.msra.mxu0 %v816
    %943 = vmatprep.subr.bf16.mxu0 %v815
    %944 = vmatpush1.bf16.msra.mxu0 %v814
    %945 = vmatprep.subr.bf16.mxu0 %v813
    %946 = vmatpush1.bf16.msra.mxu0 %v812
    %947 = vmatprep.subr.bf16.mxu0 %v811
    %948 = vmatpush1.bf16.msra.mxu0 %v810
    %949 = vmatprep.subr.bf16.mxu0 %v809
    %950 = vmatpush1.bf16.msra.mxu0 %v808
    %951 = vmatprep.subr.bf16.mxu0 %v807
    %952 = vmatpush1.bf16.msra.mxu0 %v806
    %953 = vmatprep.subr.bf16.mxu0 %v805
    %954 = vmatpush1.bf16.msra.mxu0 %v804
    %955 = vmatprep.subr.bf16.mxu0 %v803
    %956 = vmatpush1.bf16.msra.mxu0 %v802
    %957 = vmatprep.subr.bf16.mxu0 %v833
    %958 = vmatpush2.bf16.msra.mxu0 %v832
    %959 = vmatprep.subr.bf16.mxu0 %v831
    %960 = vmatpush2.bf16.msra.mxu0 %v830
    %961 = vmatprep.subr.bf16.mxu0 %v829
    %962 = vmatpush2.bf16.msra.mxu0 %v828
    %963 = vmatprep.subr.bf16.mxu0 %v827
    %964 = vmatpush2.bf16.msra.mxu0 %v826
    %965 = vmatprep.subr.bf16.mxu0 %v825
    %966 = vmatpush2.bf16.msra.mxu0 %v824
    %967 = vmatprep.subr.bf16.mxu0 %v823
    %968 = vmatpush2.bf16.msra.mxu0 %v822
    %969 = vmatprep.subr.bf16.mxu0 %v821
    %970 = vmatpush2.bf16.msra.mxu0 %v820
    %971 = vmatprep.subr.bf16.mxu0 %v819
    %972 = vmatpush2.bf16.msra.mxu0 %v818
    %973 = vmatprep.mubr.bf16.mxu0 0
    %974 = vmatmul.mubr.bf16.gmra.mxu0 0
    %v975 = vpop.f32.mrf.mxu0
    %v976 = vadd.f32 %v933, %v975
    %v977 = vpop.f32.mrf.mxu0
    %v978 = vadd.f32 %v935, %v977
    %v979 = vpop.f32.mrf.mxu0
    %v980 = vadd.f32 %v937, %v979
    %v981 = vpop.f32.mrf.mxu0
    %v982 = vadd.f32 %v939, %v981
    %983 = vdwg.mxu0
    %v984 = vtanh.pop %v976
    %v985 = vtanh.pop %v978
    %v986 = vtanh.pop %v980
    %v987 = vtanh.pop %v982
    %s988 = scalar_lea.vmem [#allocation2], 8
    %v989 = vld [vmem:[%s988] sm:$0xf]
    %v990 = vld [vmem:[%s988 + $0x4] sm:$0xf]
    %v993 = vunpack.c.l.b16 %v989
    %v994 = vunpack.c.l.b16 %v990
    %v995 = vpack.c.b16 %v994, %v993
    %997 = vmatprep.subr.bf16.mxu0 %v405
    %998 = vmatpush1.bf16.msra.mxu0 %v404
    %999 = vmatprep.subr.bf16.mxu0 %v403
    %1000 = vmatpush1.bf16.msra.mxu0 %v402
    %1001 = vmatprep.subr.bf16.mxu0 %v401
    %1002 = vmatpush1.bf16.msra.mxu0 %v400
    %1003 = vmatprep.subr.bf16.mxu0 %v399
    %1004 = vmatpush1.bf16.msra.mxu0 %v398
    %1005 = vmatprep.subr.bf16.mxu0 %v397
    %1006 = vmatpush1.bf16.msra.mxu0 %v396
    %1007 = vmatprep.subr.bf16.mxu0 %v395
    %1008 = vmatpush1.bf16.msra.mxu0 %v394
    %1009 = vmatprep.subr.bf16.mxu0 %v393
    %1010 = vmatpush1.bf16.msra.mxu0 %v392
    %1011 = vmatprep.subr.bf16.mxu0 %v391
    %1012 = vmatpush1.bf16.msra.mxu0 %v390
    %1013 = vmatprep.subr.bf16.mxu0 %v421
    %1014 = vmatpush2.bf16.msra.mxu0 %v420
    %1015 = vmatprep.subr.bf16.mxu0 %v419
    %1016 = vmatpush2.bf16.msra.mxu0 %v418
    %1017 = vmatprep.subr.bf16.mxu0 %v417
    %1018 = vmatpush2.bf16.msra.mxu0 %v416
    %1019 = vmatprep.subr.bf16.mxu0 %v415
    %1020 = vmatpush2.bf16.msra.mxu0 %v414
    %1021 = vmatprep.subr.bf16.mxu0 %v413
    %1022 = vmatpush2.bf16.msra.mxu0 %v412
    %1023 = vmatprep.subr.bf16.mxu0 %v411
    %1024 = vmatpush2.bf16.msra.mxu0 %v410
    %1025 = vmatprep.subr.bf16.mxu0 %v409
    %1026 = vmatpush2.bf16.msra.mxu0 %v408
    %1027 = vmatprep.subr.bf16.mxu0 %v407
    %1028 = vmatpush2.bf16.msra.mxu0 %v406
    %1029 = vmatprep.mubr.bf16.mxu0 %v576
    %1030 = vmatmul.mubr.bf16.gmra.mxu0 %v995
    %v1031 = vpop.f32.mrf.mxu0
    %v1032 = vadd.f32 %v219, %v1031
    %v1033 = vpop.f32.mrf.mxu0
    %v1034 = vadd.f32 %v223, %v1033
    %v1035 = vpop.f32.mrf.mxu0
    %v1036 = vadd.f32 %v219, %v1035
    %v1037 = vpop.f32.mrf.mxu0
    %v1038 = vadd.f32 %v223, %v1037
    %1039 = vdwg.mxu0
    %1040 = vmatprep.subr.bf16.mxu0 %v437
    %1041 = vmatpush1.bf16.msra.mxu0 %v436
    %1042 = vmatprep.subr.bf16.mxu0 %v435
    %1043 = vmatpush1.bf16.msra.mxu0 %v434
    %1044 = vmatprep.subr.bf16.mxu0 %v433
    %1045 = vmatpush1.bf16.msra.mxu0 %v432
    %1046 = vmatprep.subr.bf16.mxu0 %v431
    %1047 = vmatpush1.bf16.msra.mxu0 %v430
    %1048 = vmatprep.subr.bf16.mxu0 %v429
    %1049 = vmatpush1.bf16.msra.mxu0 %v428
    %1050 = vmatprep.subr.bf16.mxu0 %v427
    %1051 = vmatpush1.bf16.msra.mxu0 %v426
    %1052 = vmatprep.subr.bf16.mxu0 %v425
    %1053 = vmatpush1.bf16.msra.mxu0 %v424
    %1054 = vmatprep.subr.bf16.mxu0 %v423
    %1055 = vmatpush1.bf16.msra.mxu0 %v422
    %1056 = vmatprep.subr.bf16.mxu0 0
    %1057 = vmatpush2.bf16.msra.mxu0 0
    %1058 = vmatprep.subr.bf16.mxu0 0
    %1059 = vmatpush2.bf16.msra.mxu0 0
    %1060 = vmatprep.subr.bf16.mxu0 0
    %1061 = vmatpush2.bf16.msra.mxu0 0
    %1062 = vmatprep.subr.bf16.mxu0 0
    %1063 = vmatpush2.bf16.msra.mxu0 0
    %1064 = vmatprep.subr.bf16.mxu0 0
    %1065 = vmatpush2.bf16.msra.mxu0 0
    %1066 = vmatprep.subr.bf16.mxu0 0
    %1067 = vmatpush2.bf16.msra.mxu0 0
    %1068 = vmatprep.subr.bf16.mxu0 0
    %1069 = vmatpush2.bf16.msra.mxu0 0
    %1070 = vmatprep.subr.bf16.mxu0 0
    %1071 = vmatpush2.bf16.msra.mxu0 0
    %1072 = vmatprep.mubr.bf16.mxu0 0
    %1073 = vmatmul.mubr.bf16.gmra.mxu0 %v577
    %v1074 = vpop.f32.mrf.mxu0
    %v1075 = vadd.f32 %v1032, %v1074
    %v1076 = vpop.f32.mrf.mxu0
    %v1077 = vadd.f32 %v1034, %v1076
    %v1078 = vpop.f32.mrf.mxu0
    %v1079 = vadd.f32 %v1036, %v1078
    %v1080 = vpop.f32.mrf.mxu0
    %v1081 = vadd.f32 %v1038, %v1080
    %1082 = vdwg.mxu0
    %v1083 = vtanh.pop %v1075
    %v1084 = vtanh.pop %v1077
    %v1085 = vtanh.pop %v1079
    %v1086 = vtanh.pop %v1081
    %v1087 = vpack.c.bf16 %v1085, %v1083
    %v1088 = vpack.c.bf16 %v1086, %v1084
    %v1089 = vpack.c.bf16 %v986, %v984
    %v1090 = vpack.c.bf16 %v987, %v985
    %1091 = vmatprep.subr.bf16.mxu0 %v785
    %1092 = vmatpush1.bf16.msra.mxu0 %v784
    %1093 = vmatprep.subr.bf16.mxu0 %v783
    %1094 = vmatpush1.bf16.msra.mxu0 %v782
    %1095 = vmatprep.subr.bf16.mxu0 %v781
    %1096 = vmatpush1.bf16.msra.mxu0 %v780
    %1097 = vmatprep.subr.bf16.mxu0 %v779
    %1098 = vmatpush1.bf16.msra.mxu0 %v778
    %1099 = vmatprep.subr.bf16.mxu0 %v777
    %1100 = vmatpush1.bf16.msra.mxu0 %v776
    %1101 = vmatprep.subr.bf16.mxu0 %v775
    %1102 = vmatpush1.bf16.msra.mxu0 %v774
    %1103 = vmatprep.subr.bf16.mxu0 %v773
    %1104 = vmatpush1.bf16.msra.mxu0 %v772
    %1105 = vmatprep.subr.bf16.mxu0 %v771
    %1106 = vmatpush1.bf16.msra.mxu0 %v770
    %1107 = vmatprep.subr.bf16.mxu0 %v801
    %1108 = vmatpush2.bf16.msra.mxu0 %v800
    %1109 = vmatprep.subr.bf16.mxu0 %v799
    %1110 = vmatpush2.bf16.msra.mxu0 %v798
    %1111 = vmatprep.subr.bf16.mxu0 %v797
    %1112 = vmatpush2.bf16.msra.mxu0 %v796
    %1113 = vmatprep.subr.bf16.mxu0 %v795
    %1114 = vmatpush2.bf16.msra.mxu0 %v794
    %1115 = vmatprep.subr.bf16.mxu0 %v793
    %1116 = vmatpush2.bf16.msra.mxu0 %v792
    %1117 = vmatprep.subr.bf16.mxu0 %v791
    %1118 = vmatpush2.bf16.msra.mxu0 %v790
    %1119 = vmatprep.subr.bf16.mxu0 %v789
    %1120 = vmatpush2.bf16.msra.mxu0 %v788
    %1121 = vmatprep.subr.bf16.mxu0 %v787
    %1122 = vmatpush2.bf16.msra.mxu0 %v786
    %1123 = vmatprep.mubr.bf16.mxu0 %v1088
    %1124 = vmatmul.mubr.bf16.gmra.mxu0 %v1087
    %v1125 = vpop.f32.mrf.mxu0
    %v1126 = vadd.f32 %v231, %v1125
    %v1127 = vpop.f32.mrf.mxu0
    %v1128 = vadd.f32 %v235, %v1127
    %v1129 = vpop.f32.mrf.mxu0
    %v1130 = vadd.f32 %v231, %v1129
    %v1131 = vpop.f32.mrf.mxu0
    %v1132 = vadd.f32 %v235, %v1131
    %1133 = vdwg.mxu0
    %1134 = vmatprep.subr.bf16.mxu0 %v817
    %1135 = vmatpush1.bf16.msra.mxu0 %v816
    %1136 = vmatprep.subr.bf16.mxu0 %v815
    %1137 = vmatpush1.bf16.msra.mxu0 %v814
    %1138 = vmatprep.subr.bf16.mxu0 %v813
    %1139 = vmatpush1.bf16.msra.mxu0 %v812
    %1140 = vmatprep.subr.bf16.mxu0 %v811
    %1141 = vmatpush1.bf16.msra.mxu0 %v810
    %1142 = vmatprep.subr.bf16.mxu0 %v809
    %1143 = vmatpush1.bf16.msra.mxu0 %v808
    %1144 = vmatprep.subr.bf16.mxu0 %v807
    %1145 = vmatpush1.bf16.msra.mxu0 %v806
    %1146 = vmatprep.subr.bf16.mxu0 %v805
    %1147 = vmatpush1.bf16.msra.mxu0 %v804
    %1148 = vmatprep.subr.bf16.mxu0 %v803
    %1149 = vmatpush1.bf16.msra.mxu0 %v802
    %1150 = vmatprep.subr.bf16.mxu0 %v833
    %1151 = vmatpush2.bf16.msra.mxu0 %v832
    %1152 = vmatprep.subr.bf16.mxu0 %v831
    %1153 = vmatpush2.bf16.msra.mxu0 %v830
    %1154 = vmatprep.subr.bf16.mxu0 %v829
    %1155 = vmatpush2.bf16.msra.mxu0 %v828
    %1156 = vmatprep.subr.bf16.mxu0 %v827
    %1157 = vmatpush2.bf16.msra.mxu0 %v826
    %1158 = vmatprep.subr.bf16.mxu0 %v825
    %1159 = vmatpush2.bf16.msra.mxu0 %v824
    %1160 = vmatprep.subr.bf16.mxu0 %v823
    %1161 = vmatpush2.bf16.msra.mxu0 %v822
    %1162 = vmatprep.subr.bf16.mxu0 %v821
    %1163 = vmatpush2.bf16.msra.mxu0 %v820
    %1164 = vmatprep.subr.bf16.mxu0 %v819
    %1165 = vmatpush2.bf16.msra.mxu0 %v818
    %1166 = vmatprep.mubr.bf16.mxu0 %v1090
    %1167 = vmatmul.mubr.bf16.gmra.mxu0 %v1089
    %v1168 = vpop.f32.mrf.mxu0
    %v1169 = vadd.f32 %v1126, %v1168
    %v1170 = vpop.f32.mrf.mxu0
    %v1171 = vadd.f32 %v1128, %v1170
    %v1172 = vpop.f32.mrf.mxu0
    %v1173 = vadd.f32 %v1130, %v1172
    %v1174 = vpop.f32.mrf.mxu0
    %v1175 = vadd.f32 %v1132, %v1174
    %1176 = vdwg.mxu0
    %v1177 = vtanh.pop %v1169
    %v1178 = vtanh.pop %v1171
    %v1179 = vtanh.pop %v1173
    %v1180 = vtanh.pop %v1175
    %s1181 = scalar_lea.vmem [#allocation2], 16
    %v1182 = vld [vmem:[%s1181] sm:$0xf]
    %v1183 = vld [vmem:[%s1181 + $0x4] sm:$0xf]
    %v1186 = vunpack.c.l.b16 %v1182
    %v1187 = vunpack.c.l.b16 %v1183
    %v1188 = vpack.c.b16 %v1187, %v1186
    %1190 = vmatprep.subr.bf16.mxu0 %v405
    %1191 = vmatpush1.bf16.msra.mxu0 %v404
    %1192 = vmatprep.subr.bf16.mxu0 %v403
    %1193 = vmatpush1.bf16.msra.mxu0 %v402
    %1194 = vmatprep.subr.bf16.mxu0 %v401
    %1195 = vmatpush1.bf16.msra.mxu0 %v400
    %1196 = vmatprep.subr.bf16.mxu0 %v399
    %1197 = vmatpush1.bf16.msra.mxu0 %v398
    %1198 = vmatprep.subr.bf16.mxu0 %v397
    %1199 = vmatpush1.bf16.msra.mxu0 %v396
    %1200 = vmatprep.subr.bf16.mxu0 %v395
    %1201 = vmatpush1.bf16.msra.mxu0 %v394
    %1202 = vmatprep.subr.bf16.mxu0 %v393
    %1203 = vmatpush1.bf16.msra.mxu0 %v392
    %1204 = vmatprep.subr.bf16.mxu0 %v391
    %1205 = vmatpush1.bf16.msra.mxu0 %v390
    %1206 = vmatprep.subr.bf16.mxu0 %v421
    %1207 = vmatpush2.bf16.msra.mxu0 %v420
    %1208 = vmatprep.subr.bf16.mxu0 %v419
    %1209 = vmatpush2.bf16.msra.mxu0 %v418
    %1210 = vmatprep.subr.bf16.mxu0 %v417
    %1211 = vmatpush2.bf16.msra.mxu0 %v416
    %1212 = vmatprep.subr.bf16.mxu0 %v415
    %1213 = vmatpush2.bf16.msra.mxu0 %v414
    %1214 = vmatprep.subr.bf16.mxu0 %v413
    %1215 = vmatpush2.bf16.msra.mxu0 %v412
    %1216 = vmatprep.subr.bf16.mxu0 %v411
    %1217 = vmatpush2.bf16.msra.mxu0 %v410
    %1218 = vmatprep.subr.bf16.mxu0 %v409
    %1219 = vmatpush2.bf16.msra.mxu0 %v408
    %1220 = vmatprep.subr.bf16.mxu0 %v407
    %1221 = vmatpush2.bf16.msra.mxu0 %v406
    %1222 = vmatprep.mubr.bf16.mxu0 %v1087
    %1223 = vmatmul.mubr.bf16.gmra.mxu0 %v1188
    %v1224 = vpop.f32.mrf.mxu0
    %v1225 = vadd.f32 %v219, %v1224
    %v1226 = vpop.f32.mrf.mxu0
    %v1227 = vadd.f32 %v223, %v1226
    %v1228 = vpop.f32.mrf.mxu0
    %v1229 = vadd.f32 %v219, %v1228
    %v1230 = vpop.f32.mrf.mxu0
    %v1231 = vadd.f32 %v223, %v1230
    %1232 = vdwg.mxu0
    %1233 = vmatprep.subr.bf16.mxu0 %v437
    %1234 = vmatpush1.bf16.msra.mxu0 %v436
    %1235 = vmatprep.subr.bf16.mxu0 %v435
    %1236 = vmatpush1.bf16.msra.mxu0 %v434
    %1237 = vmatprep.subr.bf16.mxu0 %v433
    %1238 = vmatpush1.bf16.msra.mxu0 %v432
    %1239 = vmatprep.subr.bf16.mxu0 %v431
    %1240 = vmatpush1.bf16.msra.mxu0 %v430
    %1241 = vmatprep.subr.bf16.mxu0 %v429
    %1242 = vmatpush1.bf16.msra.mxu0 %v428
    %1243 = vmatprep.subr.bf16.mxu0 %v427
    %1244 = vmatpush1.bf16.msra.mxu0 %v426
    %1245 = vmatprep.subr.bf16.mxu0 %v425
    %1246 = vmatpush1.bf16.msra.mxu0 %v424
    %1247 = vmatprep.subr.bf16.mxu0 %v423
    %1248 = vmatpush1.bf16.msra.mxu0 %v422
    %1249 = vmatprep.subr.bf16.mxu0 0
    %1250 = vmatpush2.bf16.msra.mxu0 0
    %1251 = vmatprep.subr.bf16.mxu0 0
    %1252 = vmatpush2.bf16.msra.mxu0 0
    %1253 = vmatprep.subr.bf16.mxu0 0
    %1254 = vmatpush2.bf16.msra.mxu0 0
    %1255 = vmatprep.subr.bf16.mxu0 0
    %1256 = vmatpush2.bf16.msra.mxu0 0
    %1257 = vmatprep.subr.bf16.mxu0 0
    %1258 = vmatpush2.bf16.msra.mxu0 0
    %1259 = vmatprep.subr.bf16.mxu0 0
    %1260 = vmatpush2.bf16.msra.mxu0 0
    %1261 = vmatprep.subr.bf16.mxu0 0
    %1262 = vmatpush2.bf16.msra.mxu0 0
    %1263 = vmatprep.subr.bf16.mxu0 0
    %1264 = vmatpush2.bf16.msra.mxu0 0
    %1265 = vmatprep.mubr.bf16.mxu0 0
    %1266 = vmatmul.mubr.bf16.gmra.mxu0 %v1088
    %v1267 = vpop.f32.mrf.mxu0
    %v1268 = vadd.f32 %v1225, %v1267
    %v1269 = vpop.f32.mrf.mxu0
    %v1270 = vadd.f32 %v1227, %v1269
    %v1271 = vpop.f32.mrf.mxu0
    %v1272 = vadd.f32 %v1229, %v1271
    %v1273 = vpop.f32.mrf.mxu0
    %v1274 = vadd.f32 %v1231, %v1273
    %1275 = vdwg.mxu0
    %v1276 = vtanh.pop %v1268
    %v1277 = vtanh.pop %v1270
    %v1278 = vtanh.pop %v1272
    %v1279 = vtanh.pop %v1274
    %v1280 = vpack.c.bf16 %v1278, %v1276
    %v1281 = vpack.c.bf16 %v1279, %v1277
    %v1282 = vpack.c.bf16 %v1179, %v1177
    %v1283 = vpack.c.bf16 %v1180, %v1178
    %1284 = vmatprep.subr.bf16.mxu0 %v785
    %1285 = vmatpush1.bf16.msra.mxu0 %v784
    %1286 = vmatprep.subr.bf16.mxu0 %v783
    %1287 = vmatpush1.bf16.msra.mxu0 %v782
    %1288 = vmatprep.subr.bf16.mxu0 %v781
    %1289 = vmatpush1.bf16.msra.mxu0 %v780
    %1290 = vmatprep.subr.bf16.mxu0 %v779
    %1291 = vmatpush1.bf16.msra.mxu0 %v778
    %1292 = vmatprep.subr.bf16.mxu0 %v777
    %1293 = vmatpush1.bf16.msra.mxu0 %v776
    %1294 = vmatprep.subr.bf16.mxu0 %v775
    %1295 = vmatpush1.bf16.msra.mxu0 %v774
    %1296 = vmatprep.subr.bf16.mxu0 %v773
    %1297 = vmatpush1.bf16.msra.mxu0 %v772
    %1298 = vmatprep.subr.bf16.mxu0 %v771
    %1299 = vmatpush1.bf16.msra.mxu0 %v770
    %1300 = vmatprep.subr.bf16.mxu0 %v801
    %1301 = vmatpush2.bf16.msra.mxu0 %v800
    %1302 = vmatprep.subr.bf16.mxu0 %v799
    %1303 = vmatpush2.bf16.msra.mxu0 %v798
    %1304 = vmatprep.subr.bf16.mxu0 %v797
    %1305 = vmatpush2.bf16.msra.mxu0 %v796
    %1306 = vmatprep.subr.bf16.mxu0 %v795
    %1307 = vmatpush2.bf16.msra.mxu0 %v794
    %1308 = vmatprep.subr.bf16.mxu0 %v793
    %1309 = vmatpush2.bf16.msra.mxu0 %v792
    %1310 = vmatprep.subr.bf16.mxu0 %v791
    %1311 = vmatpush2.bf16.msra.mxu0 %v790
    %1312 = vmatprep.subr.bf16.mxu0 %v789
    %1313 = vmatpush2.bf16.msra.mxu0 %v788
    %1314 = vmatprep.subr.bf16.mxu0 %v787
    %1315 = vmatpush2.bf16.msra.mxu0 %v786
    %1316 = vmatprep.mubr.bf16.mxu0 %v1281
    %1317 = vmatmul.mubr.bf16.gmra.mxu0 %v1280
    %v1318 = vpop.f32.mrf.mxu0
    %v1319 = vadd.f32 %v231, %v1318
    %v1320 = vpop.f32.mrf.mxu0
    %v1321 = vadd.f32 %v235, %v1320
    %v1322 = vpop.f32.mrf.mxu0
    %v1323 = vadd.f32 %v231, %v1322
    %v1324 = vpop.f32.mrf.mxu0
    %v1325 = vadd.f32 %v235, %v1324
    %1326 = vdwg.mxu0
    %1327 = vmatprep.subr.bf16.mxu0 %v817
    %1328 = vmatpush1.bf16.msra.mxu0 %v816
    %1329 = vmatprep.subr.bf16.mxu0 %v815
    %1330 = vmatpush1.bf16.msra.mxu0 %v814
    %1331 = vmatprep.subr.bf16.mxu0 %v813
    %1332 = vmatpush1.bf16.msra.mxu0 %v812
    %1333 = vmatprep.subr.bf16.mxu0 %v811
    %1334 = vmatpush1.bf16.msra.mxu0 %v810
    %1335 = vmatprep.subr.bf16.mxu0 %v809
    %1336 = vmatpush1.bf16.msra.mxu0 %v808
    %1337 = vmatprep.subr.bf16.mxu0 %v807
    %1338 = vmatpush1.bf16.msra.mxu0 %v806
    %1339 = vmatprep.subr.bf16.mxu0 %v805
    %1340 = vmatpush1.bf16.msra.mxu0 %v804
    %1341 = vmatprep.subr.bf16.mxu0 %v803
    %1342 = vmatpush1.bf16.msra.mxu0 %v802
    %1343 = vmatprep.subr.bf16.mxu0 %v833
    %1344 = vmatpush2.bf16.msra.mxu0 %v832
    %1345 = vmatprep.subr.bf16.mxu0 %v831
    %1346 = vmatpush2.bf16.msra.mxu0 %v830
    %1347 = vmatprep.subr.bf16.mxu0 %v829
    %1348 = vmatpush2.bf16.msra.mxu0 %v828
    %1349 = vmatprep.subr.bf16.mxu0 %v827
    %1350 = vmatpush2.bf16.msra.mxu0 %v826
    %1351 = vmatprep.subr.bf16.mxu0 %v825
    %1352 = vmatpush2.bf16.msra.mxu0 %v824
    %1353 = vmatprep.subr.bf16.mxu0 %v823
    %1354 = vmatpush2.bf16.msra.mxu0 %v822
    %1355 = vmatprep.subr.bf16.mxu0 %v821
    %1356 = vmatpush2.bf16.msra.mxu0 %v820
    %1357 = vmatprep.subr.bf16.mxu0 %v819
    %1358 = vmatpush2.bf16.msra.mxu0 %v818
    %1359 = vmatprep.mubr.bf16.mxu0 %v1283
    %1360 = vmatmul.mubr.bf16.gmra.mxu0 %v1282
    %v1361 = vpop.f32.mrf.mxu0
    %v1362 = vadd.f32 %v1319, %v1361
    %v1363 = vpop.f32.mrf.mxu0
    %v1364 = vadd.f32 %v1321, %v1363
    %v1365 = vpop.f32.mrf.mxu0
    %v1366 = vadd.f32 %v1323, %v1365
    %v1367 = vpop.f32.mrf.mxu0
    %v1368 = vadd.f32 %v1325, %v1367
    %1369 = vdwg.mxu0
    %v1370 = vtanh.pop %v1362
    %v1371 = vtanh.pop %v1364
    %v1372 = vtanh.pop %v1366
    %v1373 = vtanh.pop %v1368
    %s1374 = scalar_lea.vmem [#allocation2], 24
    %v1375 = vld [vmem:[%s1374] sm:$0xf]
    %v1376 = vld [vmem:[%s1374 + $0x4] sm:$0xf]
    %v1379 = vunpack.c.l.b16 %v1375
    %v1380 = vunpack.c.l.b16 %v1376
    %v1381 = vpack.c.b16 %v1380, %v1379
    %1383 = vmatprep.subr.bf16.mxu0 %v405
    %1384 = vmatpush1.bf16.msra.mxu0 %v404
    %1385 = vmatprep.subr.bf16.mxu0 %v403
    %1386 = vmatpush1.bf16.msra.mxu0 %v402
    %1387 = vmatprep.subr.bf16.mxu0 %v401
    %1388 = vmatpush1.bf16.msra.mxu0 %v400
    %1389 = vmatprep.subr.bf16.mxu0 %v399
    %1390 = vmatpush1.bf16.msra.mxu0 %v398
    %1391 = vmatprep.subr.bf16.mxu0 %v397
    %1392 = vmatpush1.bf16.msra.mxu0 %v396
    %1393 = vmatprep.subr.bf16.mxu0 %v395
    %1394 = vmatpush1.bf16.msra.mxu0 %v394
    %1395 = vmatprep.subr.bf16.mxu0 %v393
    %1396 = vmatpush1.bf16.msra.mxu0 %v392
    %1397 = vmatprep.subr.bf16.mxu0 %v391
    %1398 = vmatpush1.bf16.msra.mxu0 %v390
    %1399 = vmatprep.subr.bf16.mxu0 %v421
    %1400 = vmatpush2.bf16.msra.mxu0 %v420
    %1401 = vmatprep.subr.bf16.mxu0 %v419
    %1402 = vmatpush2.bf16.msra.mxu0 %v418
    %1403 = vmatprep.subr.bf16.mxu0 %v417
    %1404 = vmatpush2.bf16.msra.mxu0 %v416
    %1405 = vmatprep.subr.bf16.mxu0 %v415
    %1406 = vmatpush2.bf16.msra.mxu0 %v414
    %1407 = vmatprep.subr.bf16.mxu0 %v413
    %1408 = vmatpush2.bf16.msra.mxu0 %v412
    %1409 = vmatprep.subr.bf16.mxu0 %v411
    %1410 = vmatpush2.bf16.msra.mxu0 %v410
    %1411 = vmatprep.subr.bf16.mxu0 %v409
    %1412 = vmatpush2.bf16.msra.mxu0 %v408
    %1413 = vmatprep.subr.bf16.mxu0 %v407
    %1414 = vmatpush2.bf16.msra.mxu0 %v406
    %1415 = vmatprep.mubr.bf16.mxu0 %v1280
    %1416 = vmatmul.mubr.bf16.gmra.mxu0 %v1381
    %v1417 = vpop.f32.mrf.mxu0
    %v1418 = vadd.f32 %v219, %v1417
    %v1419 = vpop.f32.mrf.mxu0
    %v1420 = vadd.f32 %v223, %v1419
    %v1421 = vpop.f32.mrf.mxu0
    %v1422 = vadd.f32 %v219, %v1421
    %v1423 = vpop.f32.mrf.mxu0
    %v1424 = vadd.f32 %v223, %v1423
    %1425 = vdwg.mxu0
    %1426 = vmatprep.subr.bf16.mxu0 %v437
    %1427 = vmatpush1.bf16.msra.mxu0 %v436
    %1428 = vmatprep.subr.bf16.mxu0 %v435
    %1429 = vmatpush1.bf16.msra.mxu0 %v434
    %1430 = vmatprep.subr.bf16.mxu0 %v433
    %1431 = vmatpush1.bf16.msra.mxu0 %v432
    %1432 = vmatprep.subr.bf16.mxu0 %v431
    %1433 = vmatpush1.bf16.msra.mxu0 %v430
    %1434 = vmatprep.subr.bf16.mxu0 %v429
    %1435 = vmatpush1.bf16.msra.mxu0 %v428
    %1436 = vmatprep.subr.bf16.mxu0 %v427
    %1437 = vmatpush1.bf16.msra.mxu0 %v426
    %1438 = vmatprep.subr.bf16.mxu0 %v425
    %1439 = vmatpush1.bf16.msra.mxu0 %v424
    %1440 = vmatprep.subr.bf16.mxu0 %v423
    %1441 = vmatpush1.bf16.msra.mxu0 %v422
    %1442 = vmatprep.subr.bf16.mxu0 0
    %1443 = vmatpush2.bf16.msra.mxu0 0
    %1444 = vmatprep.subr.bf16.mxu0 0
    %1445 = vmatpush2.bf16.msra.mxu0 0
    %1446 = vmatprep.subr.bf16.mxu0 0
    %1447 = vmatpush2.bf16.msra.mxu0 0
    %1448 = vmatprep.subr.bf16.mxu0 0
    %1449 = vmatpush2.bf16.msra.mxu0 0
    %1450 = vmatprep.subr.bf16.mxu0 0
    %1451 = vmatpush2.bf16.msra.mxu0 0
    %1452 = vmatprep.subr.bf16.mxu0 0
    %1453 = vmatpush2.bf16.msra.mxu0 0
    %1454 = vmatprep.subr.bf16.mxu0 0
    %1455 = vmatpush2.bf16.msra.mxu0 0
    %1456 = vmatprep.subr.bf16.mxu0 0
    %1457 = vmatpush2.bf16.msra.mxu0 0
    %1458 = vmatprep.mubr.bf16.mxu0 0
    %1459 = vmatmul.mubr.bf16.gmra.mxu0 %v1281
    %v1460 = vpop.f32.mrf.mxu0
    %v1461 = vadd.f32 %v1418, %v1460
    %v1462 = vpop.f32.mrf.mxu0
    %v1463 = vadd.f32 %v1420, %v1462
    %v1464 = vpop.f32.mrf.mxu0
    %v1465 = vadd.f32 %v1422, %v1464
    %v1466 = vpop.f32.mrf.mxu0
    %v1467 = vadd.f32 %v1424, %v1466
    %1468 = vdwg.mxu0
    %v1469 = vtanh.pop %v1461
    %v1470 = vtanh.pop %v1463
    %v1471 = vtanh.pop %v1465
    %v1472 = vtanh.pop %v1467
    %v1473 = vpack.c.bf16 %v1471, %v1469
    %v1474 = vpack.c.bf16 %v1472, %v1470
    %v1475 = vpack.c.bf16 %v1372, %v1370
    %v1476 = vpack.c.bf16 %v1373, %v1371
    %1477 = vmatprep.subr.bf16.mxu0 %v785
    %1478 = vmatpush1.bf16.msra.mxu0 %v784
    %1479 = vmatprep.subr.bf16.mxu0 %v783
    %1480 = vmatpush1.bf16.msra.mxu0 %v782
    %1481 = vmatprep.subr.bf16.mxu0 %v781
    %1482 = vmatpush1.bf16.msra.mxu0 %v780
    %1483 = vmatprep.subr.bf16.mxu0 %v779
    %1484 = vmatpush1.bf16.msra.mxu0 %v778
    %1485 = vmatprep.subr.bf16.mxu0 %v777
    %1486 = vmatpush1.bf16.msra.mxu0 %v776
    %1487 = vmatprep.subr.bf16.mxu0 %v775
    %1488 = vmatpush1.bf16.msra.mxu0 %v774
    %1489 = vmatprep.subr.bf16.mxu0 %v773
    %1490 = vmatpush1.bf16.msra.mxu0 %v772
    %1491 = vmatprep.subr.bf16.mxu0 %v771
    %1492 = vmatpush1.bf16.msra.mxu0 %v770
    %1493 = vmatprep.subr.bf16.mxu0 %v801
    %1494 = vmatpush2.bf16.msra.mxu0 %v800
    %1495 = vmatprep.subr.bf16.mxu0 %v799
    %1496 = vmatpush2.bf16.msra.mxu0 %v798
    %1497 = vmatprep.subr.bf16.mxu0 %v797
    %1498 = vmatpush2.bf16.msra.mxu0 %v796
    %1499 = vmatprep.subr.bf16.mxu0 %v795
    %1500 = vmatpush2.bf16.msra.mxu0 %v794
    %1501 = vmatprep.subr.bf16.mxu0 %v793
    %1502 = vmatpush2.bf16.msra.mxu0 %v792
    %1503 = vmatprep.subr.bf16.mxu0 %v791
    %1504 = vmatpush2.bf16.msra.mxu0 %v790
    %1505 = vmatprep.subr.bf16.mxu0 %v789
    %1506 = vmatpush2.bf16.msra.mxu0 %v788
    %1507 = vmatprep.subr.bf16.mxu0 %v787
    %1508 = vmatpush2.bf16.msra.mxu0 %v786
    %1509 = vmatprep.mubr.bf16.mxu0 %v1474
    %1510 = vmatmul.mubr.bf16.gmra.mxu0 %v1473
    %v1511 = vpop.f32.mrf.mxu0
    %v1512 = vadd.f32 %v231, %v1511
    %v1513 = vpop.f32.mrf.mxu0
    %v1514 = vadd.f32 %v235, %v1513
    %v1515 = vpop.f32.mrf.mxu0
    %v1516 = vadd.f32 %v231, %v1515
    %v1517 = vpop.f32.mrf.mxu0
    %v1518 = vadd.f32 %v235, %v1517
    %1519 = vdwg.mxu0
    %1520 = vmatprep.subr.bf16.mxu0 %v817
    %1521 = vmatpush1.bf16.msra.mxu0 %v816
    %1522 = vmatprep.subr.bf16.mxu0 %v815
    %1523 = vmatpush1.bf16.msra.mxu0 %v814
    %1524 = vmatprep.subr.bf16.mxu0 %v813
    %1525 = vmatpush1.bf16.msra.mxu0 %v812
    %1526 = vmatprep.subr.bf16.mxu0 %v811
    %1527 = vmatpush1.bf16.msra.mxu0 %v810
    %1528 = vmatprep.subr.bf16.mxu0 %v809
    %1529 = vmatpush1.bf16.msra.mxu0 %v808
    %1530 = vmatprep.subr.bf16.mxu0 %v807
    %1531 = vmatpush1.bf16.msra.mxu0 %v806
    %1532 = vmatprep.subr.bf16.mxu0 %v805
    %1533 = vmatpush1.bf16.msra.mxu0 %v804
    %1534 = vmatprep.subr.bf16.mxu0 %v803
    %1535 = vmatpush1.bf16.msra.mxu0 %v802
    %1536 = vmatprep.subr.bf16.mxu0 %v833
    %1537 = vmatpush2.bf16.msra.mxu0 %v832
    %1538 = vmatprep.subr.bf16.mxu0 %v831
    %1539 = vmatpush2.bf16.msra.mxu0 %v830
    %1540 = vmatprep.subr.bf16.mxu0 %v829
    %1541 = vmatpush2.bf16.msra.mxu0 %v828
    %1542 = vmatprep.subr.bf16.mxu0 %v827
    %1543 = vmatpush2.bf16.msra.mxu0 %v826
    %1544 = vmatprep.subr.bf16.mxu0 %v825
    %1545 = vmatpush2.bf16.msra.mxu0 %v824
    %1546 = vmatprep.subr.bf16.mxu0 %v823
    %1547 = vmatpush2.bf16.msra.mxu0 %v822
    %1548 = vmatprep.subr.bf16.mxu0 %v821
    %1549 = vmatpush2.bf16.msra.mxu0 %v820
    %1550 = vmatprep.subr.bf16.mxu0 %v819
    %1551 = vmatpush2.bf16.msra.mxu0 %v818
    %1552 = vmatprep.mubr.bf16.mxu0 %v1476
    %1553 = vmatmul.mubr.bf16.gmra.mxu0 %v1475
    %v1554 = vpop.f32.mrf.mxu0
    %v1555 = vadd.f32 %v1512, %v1554
    %v1556 = vpop.f32.mrf.mxu0
    %v1557 = vadd.f32 %v1514, %v1556
    %v1558 = vpop.f32.mrf.mxu0
    %v1559 = vadd.f32 %v1516, %v1558
    %v1560 = vpop.f32.mrf.mxu0
    %v1561 = vadd.f32 %v1518, %v1560
    %1562 = vdwg.mxu0
    %v1563 = vtanh.pop %v1555
    %v1564 = vtanh.pop %v1557
    %v1565 = vtanh.pop %v1559
    %v1566 = vtanh.pop %v1561
    %s1567 = scalar_lea.vmem [#allocation2], 32
    %v1568 = vld [vmem:[%s1567] sm:$0xf]
    %v1569 = vld [vmem:[%s1567 + $0x4] sm:$0xf]
    %v1572 = vunpack.c.l.b16 %v1568
    %v1573 = vunpack.c.l.b16 %v1569
    %v1574 = vpack.c.b16 %v1573, %v1572
    %1576 = vmatprep.subr.bf16.mxu0 %v405
    %1577 = vmatpush1.bf16.msra.mxu0 %v404
    %1578 = vmatprep.subr.bf16.mxu0 %v403
    %1579 = vmatpush1.bf16.msra.mxu0 %v402
    %1580 = vmatprep.subr.bf16.mxu0 %v401
    %1581 = vmatpush1.bf16.msra.mxu0 %v400
    %1582 = vmatprep.subr.bf16.mxu0 %v399
    %1583 = vmatpush1.bf16.msra.mxu0 %v398
    %1584 = vmatprep.subr.bf16.mxu0 %v397
    %1585 = vmatpush1.bf16.msra.mxu0 %v396
    %1586 = vmatprep.subr.bf16.mxu0 %v395
    %1587 = vmatpush1.bf16.msra.mxu0 %v394
    %1588 = vmatprep.subr.bf16.mxu0 %v393
    %1589 = vmatpush1.bf16.msra.mxu0 %v392
    %1590 = vmatprep.subr.bf16.mxu0 %v391
    %1591 = vmatpush1.bf16.msra.mxu0 %v390
    %1592 = vmatprep.subr.bf16.mxu0 %v421
    %1593 = vmatpush2.bf16.msra.mxu0 %v420
    %1594 = vmatprep.subr.bf16.mxu0 %v419
    %1595 = vmatpush2.bf16.msra.mxu0 %v418
    %1596 = vmatprep.subr.bf16.mxu0 %v417
    %1597 = vmatpush2.bf16.msra.mxu0 %v416
    %1598 = vmatprep.subr.bf16.mxu0 %v415
    %1599 = vmatpush2.bf16.msra.mxu0 %v414
    %1600 = vmatprep.subr.bf16.mxu0 %v413
    %1601 = vmatpush2.bf16.msra.mxu0 %v412
    %1602 = vmatprep.subr.bf16.mxu0 %v411
    %1603 = vmatpush2.bf16.msra.mxu0 %v410
    %1604 = vmatprep.subr.bf16.mxu0 %v409
    %1605 = vmatpush2.bf16.msra.mxu0 %v408
    %1606 = vmatprep.subr.bf16.mxu0 %v407
    %1607 = vmatpush2.bf16.msra.mxu0 %v406
    %1608 = vmatprep.mubr.bf16.mxu0 %v1473
    %1609 = vmatmul.mubr.bf16.gmra.mxu0 %v1574
    %v1610 = vpop.f32.mrf.mxu0
    %v1611 = vadd.f32 %v219, %v1610
    %v1612 = vpop.f32.mrf.mxu0
    %v1613 = vadd.f32 %v223, %v1612
    %v1614 = vpop.f32.mrf.mxu0
    %v1615 = vadd.f32 %v219, %v1614
    %v1616 = vpop.f32.mrf.mxu0
    %v1617 = vadd.f32 %v223, %v1616
    %1618 = vdwg.mxu0
    %1619 = vmatprep.subr.bf16.mxu0 %v437
    %1620 = vmatpush1.bf16.msra.mxu0 %v436
    %1621 = vmatprep.subr.bf16.mxu0 %v435
    %1622 = vmatpush1.bf16.msra.mxu0 %v434
    %1623 = vmatprep.subr.bf16.mxu0 %v433
    %1624 = vmatpush1.bf16.msra.mxu0 %v432
    %1625 = vmatprep.subr.bf16.mxu0 %v431
    %1626 = vmatpush1.bf16.msra.mxu0 %v430
    %1627 = vmatprep.subr.bf16.mxu0 %v429
    %1628 = vmatpush1.bf16.msra.mxu0 %v428
    %1629 = vmatprep.subr.bf16.mxu0 %v427
    %1630 = vmatpush1.bf16.msra.mxu0 %v426
    %1631 = vmatprep.subr.bf16.mxu0 %v425
    %1632 = vmatpush1.bf16.msra.mxu0 %v424
    %1633 = vmatprep.subr.bf16.mxu0 %v423
    %1634 = vmatpush1.bf16.msra.mxu0 %v422
    %1635 = vmatprep.subr.bf16.mxu0 0
    %1636 = vmatpush2.bf16.msra.mxu0 0
    %1637 = vmatprep.subr.bf16.mxu0 0
    %1638 = vmatpush2.bf16.msra.mxu0 0
    %1639 = vmatprep.subr.bf16.mxu0 0
    %1640 = vmatpush2.bf16.msra.mxu0 0
    %1641 = vmatprep.subr.bf16.mxu0 0
    %1642 = vmatpush2.bf16.msra.mxu0 0
    %1643 = vmatprep.subr.bf16.mxu0 0
    %1644 = vmatpush2.bf16.msra.mxu0 0
    %1645 = vmatprep.subr.bf16.mxu0 0
    %1646 = vmatpush2.bf16.msra.mxu0 0
    %1647 = vmatprep.subr.bf16.mxu0 0
    %1648 = vmatpush2.bf16.msra.mxu0 0
    %1649 = vmatprep.subr.bf16.mxu0 0
    %1650 = vmatpush2.bf16.msra.mxu0 0
    %1651 = vmatprep.mubr.bf16.mxu0 0
    %1652 = vmatmul.mubr.bf16.gmra.mxu0 %v1474
    %v1653 = vpop.f32.mrf.mxu0
    %v1654 = vadd.f32 %v1611, %v1653
    %v1655 = vpop.f32.mrf.mxu0
    %v1656 = vadd.f32 %v1613, %v1655
    %v1657 = vpop.f32.mrf.mxu0
    %v1658 = vadd.f32 %v1615, %v1657
    %v1659 = vpop.f32.mrf.mxu0
    %v1660 = vadd.f32 %v1617, %v1659
    %1661 = vdwg.mxu0
    %v1662 = vtanh.pop %v1654
    %v1663 = vtanh.pop %v1656
    %v1664 = vtanh.pop %v1658
    %v1665 = vtanh.pop %v1660
    %v1666 = vpack.c.bf16 %v1664, %v1662
    %v1667 = vpack.c.bf16 %v1665, %v1663
    %v1668 = vpack.c.bf16 %v1565, %v1563
    %v1669 = vpack.c.bf16 %v1566, %v1564
    %1670 = vmatprep.subr.bf16.mxu0 %v785
    %1671 = vmatpush1.bf16.msra.mxu0 %v784
    %1672 = vmatprep.subr.bf16.mxu0 %v783
    %1673 = vmatpush1.bf16.msra.mxu0 %v782
    %1674 = vmatprep.subr.bf16.mxu0 %v781
    %1675 = vmatpush1.bf16.msra.mxu0 %v780
    %1676 = vmatprep.subr.bf16.mxu0 %v779
    %1677 = vmatpush1.bf16.msra.mxu0 %v778
    %1678 = vmatprep.subr.bf16.mxu0 %v777
    %1679 = vmatpush1.bf16.msra.mxu0 %v776
    %1680 = vmatprep.subr.bf16.mxu0 %v775
    %1681 = vmatpush1.bf16.msra.mxu0 %v774
    %1682 = vmatprep.subr.bf16.mxu0 %v773
    %1683 = vmatpush1.bf16.msra.mxu0 %v772
    %1684 = vmatprep.subr.bf16.mxu0 %v771
    %1685 = vmatpush1.bf16.msra.mxu0 %v770
    %1686 = vmatprep.subr.bf16.mxu0 %v801
    %1687 = vmatpush2.bf16.msra.mxu0 %v800
    %1688 = vmatprep.subr.bf16.mxu0 %v799
    %1689 = vmatpush2.bf16.msra.mxu0 %v798
    %1690 = vmatprep.subr.bf16.mxu0 %v797
    %1691 = vmatpush2.bf16.msra.mxu0 %v796
    %1692 = vmatprep.subr.bf16.mxu0 %v795
    %1693 = vmatpush2.bf16.msra.mxu0 %v794
    %1694 = vmatprep.subr.bf16.mxu0 %v793
    %1695 = vmatpush2.bf16.msra.mxu0 %v792
    %1696 = vmatprep.subr.bf16.mxu0 %v791
    %1697 = vmatpush2.bf16.msra.mxu0 %v790
    %1698 = vmatprep.subr.bf16.mxu0 %v789
    %1699 = vmatpush2.bf16.msra.mxu0 %v788
    %1700 = vmatprep.subr.bf16.mxu0 %v787
    %1701 = vmatpush2.bf16.msra.mxu0 %v786
    %1702 = vmatprep.mubr.bf16.mxu0 %v1667
    %1703 = vmatmul.mubr.bf16.gmra.mxu0 %v1666
    %v1704 = vpop.f32.mrf.mxu0
    %v1705 = vadd.f32 %v231, %v1704
    %v1706 = vpop.f32.mrf.mxu0
    %v1707 = vadd.f32 %v235, %v1706
    %v1708 = vpop.f32.mrf.mxu0
    %v1709 = vadd.f32 %v231, %v1708
    %v1710 = vpop.f32.mrf.mxu0
    %v1711 = vadd.f32 %v235, %v1710
    %1712 = vdwg.mxu0
    %1713 = vmatprep.subr.bf16.mxu0 %v817
    %1714 = vmatpush1.bf16.msra.mxu0 %v816
    %1715 = vmatprep.subr.bf16.mxu0 %v815
    %1716 = vmatpush1.bf16.msra.mxu0 %v814
    %1717 = vmatprep.subr.bf16.mxu0 %v813
    %1718 = vmatpush1.bf16.msra.mxu0 %v812
    %1719 = vmatprep.subr.bf16.mxu0 %v811
    %1720 = vmatpush1.bf16.msra.mxu0 %v810
    %1721 = vmatprep.subr.bf16.mxu0 %v809
    %1722 = vmatpush1.bf16.msra.mxu0 %v808
    %1723 = vmatprep.subr.bf16.mxu0 %v807
    %1724 = vmatpush1.bf16.msra.mxu0 %v806
    %1725 = vmatprep.subr.bf16.mxu0 %v805
    %1726 = vmatpush1.bf16.msra.mxu0 %v804
    %1727 = vmatprep.subr.bf16.mxu0 %v803
    %1728 = vmatpush1.bf16.msra.mxu0 %v802
    %1729 = vmatprep.subr.bf16.mxu0 %v833
    %1730 = vmatpush2.bf16.msra.mxu0 %v832
    %1731 = vmatprep.subr.bf16.mxu0 %v831
    %1732 = vmatpush2.bf16.msra.mxu0 %v830
    %1733 = vmatprep.subr.bf16.mxu0 %v829
    %1734 = vmatpush2.bf16.msra.mxu0 %v828
    %1735 = vmatprep.subr.bf16.mxu0 %v827
    %1736 = vmatpush2.bf16.msra.mxu0 %v826
    %1737 = vmatprep.subr.bf16.mxu0 %v825
    %1738 = vmatpush2.bf16.msra.mxu0 %v824
    %1739 = vmatprep.subr.bf16.mxu0 %v823
    %1740 = vmatpush2.bf16.msra.mxu0 %v822
    %1741 = vmatprep.subr.bf16.mxu0 %v821
    %1742 = vmatpush2.bf16.msra.mxu0 %v820
    %1743 = vmatprep.subr.bf16.mxu0 %v819
    %1744 = vmatpush2.bf16.msra.mxu0 %v818
    %1745 = vmatprep.mubr.bf16.mxu0 %v1669
    %1746 = vmatmul.mubr.bf16.gmra.mxu0 %v1668
    %v1747 = vpop.f32.mrf.mxu0
    %v1748 = vadd.f32 %v1705, %v1747
    %v1749 = vpop.f32.mrf.mxu0
    %v1750 = vadd.f32 %v1707, %v1749
    %v1751 = vpop.f32.mrf.mxu0
    %v1752 = vadd.f32 %v1709, %v1751
    %v1753 = vpop.f32.mrf.mxu0
    %v1754 = vadd.f32 %v1711, %v1753
    %1755 = vdwg.mxu0
    %v1756 = vtanh.pop %v1748
    %v1757 = vtanh.pop %v1750
    %v1758 = vtanh.pop %v1752
    %v1759 = vtanh.pop %v1754
    %s1760 = scalar_lea.vmem [#allocation2], 40
    %v1761 = vld [vmem:[%s1760] sm:$0xf]
    %v1762 = vld [vmem:[%s1760 + $0x4] sm:$0xf]
    %v1765 = vunpack.c.l.b16 %v1761
    %v1766 = vunpack.c.l.b16 %v1762
    %v1767 = vpack.c.b16 %v1766, %v1765
    %1769 = vmatprep.subr.bf16.mxu0 %v405
    %1770 = vmatpush1.bf16.msra.mxu0 %v404
    %1771 = vmatprep.subr.bf16.mxu0 %v403
    %1772 = vmatpush1.bf16.msra.mxu0 %v402
    %1773 = vmatprep.subr.bf16.mxu0 %v401
    %1774 = vmatpush1.bf16.msra.mxu0 %v400
    %1775 = vmatprep.subr.bf16.mxu0 %v399
    %1776 = vmatpush1.bf16.msra.mxu0 %v398
    %1777 = vmatprep.subr.bf16.mxu0 %v397
    %1778 = vmatpush1.bf16.msra.mxu0 %v396
    %1779 = vmatprep.subr.bf16.mxu0 %v395
    %1780 = vmatpush1.bf16.msra.mxu0 %v394
    %1781 = vmatprep.subr.bf16.mxu0 %v393
    %1782 = vmatpush1.bf16.msra.mxu0 %v392
    %1783 = vmatprep.subr.bf16.mxu0 %v391
    %1784 = vmatpush1.bf16.msra.mxu0 %v390
    %1785 = vmatprep.subr.bf16.mxu0 %v421
    %1786 = vmatpush2.bf16.msra.mxu0 %v420
    %1787 = vmatprep.subr.bf16.mxu0 %v419
    %1788 = vmatpush2.bf16.msra.mxu0 %v418
    %1789 = vmatprep.subr.bf16.mxu0 %v417
    %1790 = vmatpush2.bf16.msra.mxu0 %v416
    %1791 = vmatprep.subr.bf16.mxu0 %v415
    %1792 = vmatpush2.bf16.msra.mxu0 %v414
    %1793 = vmatprep.subr.bf16.mxu0 %v413
    %1794 = vmatpush2.bf16.msra.mxu0 %v412
    %1795 = vmatprep.subr.bf16.mxu0 %v411
    %1796 = vmatpush2.bf16.msra.mxu0 %v410
    %1797 = vmatprep.subr.bf16.mxu0 %v409
    %1798 = vmatpush2.bf16.msra.mxu0 %v408
    %1799 = vmatprep.subr.bf16.mxu0 %v407
    %1800 = vmatpush2.bf16.msra.mxu0 %v406
    %1801 = vmatprep.mubr.bf16.mxu0 %v1666
    %1802 = vmatmul.mubr.bf16.gmra.mxu0 %v1767
    %v1803 = vpop.f32.mrf.mxu0
    %v1804 = vadd.f32 %v219, %v1803
    %v1805 = vpop.f32.mrf.mxu0
    %v1806 = vadd.f32 %v223, %v1805
    %v1807 = vpop.f32.mrf.mxu0
    %v1808 = vadd.f32 %v219, %v1807
    %v1809 = vpop.f32.mrf.mxu0
    %v1810 = vadd.f32 %v223, %v1809
    %1811 = vdwg.mxu0
    %1812 = vmatprep.subr.bf16.mxu0 %v437
    %1813 = vmatpush1.bf16.msra.mxu0 %v436
    %1814 = vmatprep.subr.bf16.mxu0 %v435
    %1815 = vmatpush1.bf16.msra.mxu0 %v434
    %1816 = vmatprep.subr.bf16.mxu0 %v433
    %1817 = vmatpush1.bf16.msra.mxu0 %v432
    %1818 = vmatprep.subr.bf16.mxu0 %v431
    %1819 = vmatpush1.bf16.msra.mxu0 %v430
    %1820 = vmatprep.subr.bf16.mxu0 %v429
    %1821 = vmatpush1.bf16.msra.mxu0 %v428
    %1822 = vmatprep.subr.bf16.mxu0 %v427
    %1823 = vmatpush1.bf16.msra.mxu0 %v426
    %1824 = vmatprep.subr.bf16.mxu0 %v425
    %1825 = vmatpush1.bf16.msra.mxu0 %v424
    %1826 = vmatprep.subr.bf16.mxu0 %v423
    %1827 = vmatpush1.bf16.msra.mxu0 %v422
    %1828 = vmatprep.subr.bf16.mxu0 0
    %1829 = vmatpush2.bf16.msra.mxu0 0
    %1830 = vmatprep.subr.bf16.mxu0 0
    %1831 = vmatpush2.bf16.msra.mxu0 0
    %1832 = vmatprep.subr.bf16.mxu0 0
    %1833 = vmatpush2.bf16.msra.mxu0 0
    %1834 = vmatprep.subr.bf16.mxu0 0
    %1835 = vmatpush2.bf16.msra.mxu0 0
    %1836 = vmatprep.subr.bf16.mxu0 0
    %1837 = vmatpush2.bf16.msra.mxu0 0
    %1838 = vmatprep.subr.bf16.mxu0 0
    %1839 = vmatpush2.bf16.msra.mxu0 0
    %1840 = vmatprep.subr.bf16.mxu0 0
    %1841 = vmatpush2.bf16.msra.mxu0 0
    %1842 = vmatprep.subr.bf16.mxu0 0
    %1843 = vmatpush2.bf16.msra.mxu0 0
    %1844 = vmatprep.mubr.bf16.mxu0 0
    %1845 = vmatmul.mubr.bf16.gmra.mxu0 %v1667
    %v1846 = vpop.f32.mrf.mxu0
    %v1847 = vadd.f32 %v1804, %v1846
    %v1848 = vpop.f32.mrf.mxu0
    %v1849 = vadd.f32 %v1806, %v1848
    %v1850 = vpop.f32.mrf.mxu0
    %v1851 = vadd.f32 %v1808, %v1850
    %v1852 = vpop.f32.mrf.mxu0
    %v1853 = vadd.f32 %v1810, %v1852
    %1854 = vdwg.mxu0
    %v1855 = vtanh.pop %v1847
    %v1856 = vtanh.pop %v1849
    %v1857 = vtanh.pop %v1851
    %v1858 = vtanh.pop %v1853
    %v1859 = vpack.c.bf16 %v1857, %v1855
    %v1860 = vpack.c.bf16 %v1858, %v1856
    %v1861 = vpack.c.bf16 %v1758, %v1756
    %v1862 = vpack.c.bf16 %v1759, %v1757
    %1863 = vmatprep.subr.bf16.mxu0 %v785
    %1864 = vmatpush1.bf16.msra.mxu0 %v784
    %1865 = vmatprep.subr.bf16.mxu0 %v783
    %1866 = vmatpush1.bf16.msra.mxu0 %v782
    %1867 = vmatprep.subr.bf16.mxu0 %v781
    %1868 = vmatpush1.bf16.msra.mxu0 %v780
    %1869 = vmatprep.subr.bf16.mxu0 %v779
    %1870 = vmatpush1.bf16.msra.mxu0 %v778
    %1871 = vmatprep.subr.bf16.mxu0 %v777
    %1872 = vmatpush1.bf16.msra.mxu0 %v776
    %1873 = vmatprep.subr.bf16.mxu0 %v775
    %1874 = vmatpush1.bf16.msra.mxu0 %v774
    %1875 = vmatprep.subr.bf16.mxu0 %v773
    %1876 = vmatpush1.bf16.msra.mxu0 %v772
    %1877 = vmatprep.subr.bf16.mxu0 %v771
    %1878 = vmatpush1.bf16.msra.mxu0 %v770
    %1879 = vmatprep.subr.bf16.mxu0 %v801
    %1880 = vmatpush2.bf16.msra.mxu0 %v800
    %1881 = vmatprep.subr.bf16.mxu0 %v799
    %1882 = vmatpush2.bf16.msra.mxu0 %v798
    %1883 = vmatprep.subr.bf16.mxu0 %v797
    %1884 = vmatpush2.bf16.msra.mxu0 %v796
    %1885 = vmatprep.subr.bf16.mxu0 %v795
    %1886 = vmatpush2.bf16.msra.mxu0 %v794
    %1887 = vmatprep.subr.bf16.mxu0 %v793
    %1888 = vmatpush2.bf16.msra.mxu0 %v792
    %1889 = vmatprep.subr.bf16.mxu0 %v791
    %1890 = vmatpush2.bf16.msra.mxu0 %v790
    %1891 = vmatprep.subr.bf16.mxu0 %v789
    %1892 = vmatpush2.bf16.msra.mxu0 %v788
    %1893 = vmatprep.subr.bf16.mxu0 %v787
    %1894 = vmatpush2.bf16.msra.mxu0 %v786
    %1895 = vmatprep.mubr.bf16.mxu0 %v1860
    %1896 = vmatmul.mubr.bf16.gmra.mxu0 %v1859
    %v1897 = vpop.f32.mrf.mxu0
    %v1898 = vadd.f32 %v231, %v1897
    %v1899 = vpop.f32.mrf.mxu0
    %v1900 = vadd.f32 %v235, %v1899
    %v1901 = vpop.f32.mrf.mxu0
    %v1902 = vadd.f32 %v231, %v1901
    %v1903 = vpop.f32.mrf.mxu0
    %v1904 = vadd.f32 %v235, %v1903
    %1905 = vdwg.mxu0
    %1906 = vmatprep.subr.bf16.mxu0 %v817
    %1907 = vmatpush1.bf16.msra.mxu0 %v816
    %1908 = vmatprep.subr.bf16.mxu0 %v815
    %1909 = vmatpush1.bf16.msra.mxu0 %v814
    %1910 = vmatprep.subr.bf16.mxu0 %v813
    %1911 = vmatpush1.bf16.msra.mxu0 %v812
    %1912 = vmatprep.subr.bf16.mxu0 %v811
    %1913 = vmatpush1.bf16.msra.mxu0 %v810
    %1914 = vmatprep.subr.bf16.mxu0 %v809
    %1915 = vmatpush1.bf16.msra.mxu0 %v808
    %1916 = vmatprep.subr.bf16.mxu0 %v807
    %1917 = vmatpush1.bf16.msra.mxu0 %v806
    %1918 = vmatprep.subr.bf16.mxu0 %v805
    %1919 = vmatpush1.bf16.msra.mxu0 %v804
    %1920 = vmatprep.subr.bf16.mxu0 %v803
    %1921 = vmatpush1.bf16.msra.mxu0 %v802
    %1922 = vmatprep.subr.bf16.mxu0 %v833
    %1923 = vmatpush2.bf16.msra.mxu0 %v832
    %1924 = vmatprep.subr.bf16.mxu0 %v831
    %1925 = vmatpush2.bf16.msra.mxu0 %v830
    %1926 = vmatprep.subr.bf16.mxu0 %v829
    %1927 = vmatpush2.bf16.msra.mxu0 %v828
    %1928 = vmatprep.subr.bf16.mxu0 %v827
    %1929 = vmatpush2.bf16.msra.mxu0 %v826
    %1930 = vmatprep.subr.bf16.mxu0 %v825
    %1931 = vmatpush2.bf16.msra.mxu0 %v824
    %1932 = vmatprep.subr.bf16.mxu0 %v823
    %1933 = vmatpush2.bf16.msra.mxu0 %v822
    %1934 = vmatprep.subr.bf16.mxu0 %v821
    %1935 = vmatpush2.bf16.msra.mxu0 %v820
    %1936 = vmatprep.subr.bf16.mxu0 %v819
    %1937 = vmatpush2.bf16.msra.mxu0 %v818
    %1938 = vmatprep.mubr.bf16.mxu0 %v1862
    %1939 = vmatmul.mubr.bf16.gmra.mxu0 %v1861
    %v1940 = vpop.f32.mrf.mxu0
    %v1941 = vadd.f32 %v1898, %v1940
    %v1942 = vpop.f32.mrf.mxu0
    %v1943 = vadd.f32 %v1900, %v1942
    %v1944 = vpop.f32.mrf.mxu0
    %v1945 = vadd.f32 %v1902, %v1944
    %v1946 = vpop.f32.mrf.mxu0
    %v1947 = vadd.f32 %v1904, %v1946
    %1948 = vdwg.mxu0
    %v1949 = vtanh.pop %v1941
    %v1950 = vtanh.pop %v1943
    %v1951 = vtanh.pop %v1945
    %v1952 = vtanh.pop %v1947
    %s1953 = scalar_lea.vmem [#allocation2], 48
    %v1954 = vld [vmem:[%s1953] sm:$0xf]
    %v1955 = vld [vmem:[%s1953 + $0x4] sm:$0xf]
    %v1958 = vunpack.c.l.b16 %v1954
    %v1959 = vunpack.c.l.b16 %v1955
    %v1960 = vpack.c.b16 %v1959, %v1958
    %1962 = vmatprep.subr.bf16.mxu0 %v405
    %1963 = vmatpush1.bf16.msra.mxu0 %v404
    %1964 = vmatprep.subr.bf16.mxu0 %v403
    %1965 = vmatpush1.bf16.msra.mxu0 %v402
    %1966 = vmatprep.subr.bf16.mxu0 %v401
    %1967 = vmatpush1.bf16.msra.mxu0 %v400
    %1968 = vmatprep.subr.bf16.mxu0 %v399
    %1969 = vmatpush1.bf16.msra.mxu0 %v398
    %1970 = vmatprep.subr.bf16.mxu0 %v397
    %1971 = vmatpush1.bf16.msra.mxu0 %v396
    %1972 = vmatprep.subr.bf16.mxu0 %v395
    %1973 = vmatpush1.bf16.msra.mxu0 %v394
    %1974 = vmatprep.subr.bf16.mxu0 %v393
    %1975 = vmatpush1.bf16.msra.mxu0 %v392
    %1976 = vmatprep.subr.bf16.mxu0 %v391
    %1977 = vmatpush1.bf16.msra.mxu0 %v390
    %1978 = vmatprep.subr.bf16.mxu0 %v421
    %1979 = vmatpush2.bf16.msra.mxu0 %v420
    %1980 = vmatprep.subr.bf16.mxu0 %v419
    %1981 = vmatpush2.bf16.msra.mxu0 %v418
    %1982 = vmatprep.subr.bf16.mxu0 %v417
    %1983 = vmatpush2.bf16.msra.mxu0 %v416
    %1984 = vmatprep.subr.bf16.mxu0 %v415
    %1985 = vmatpush2.bf16.msra.mxu0 %v414
    %1986 = vmatprep.subr.bf16.mxu0 %v413
    %1987 = vmatpush2.bf16.msra.mxu0 %v412
    %1988 = vmatprep.subr.bf16.mxu0 %v411
    %1989 = vmatpush2.bf16.msra.mxu0 %v410
    %1990 = vmatprep.subr.bf16.mxu0 %v409
    %1991 = vmatpush2.bf16.msra.mxu0 %v408
    %1992 = vmatprep.subr.bf16.mxu0 %v407
    %1993 = vmatpush2.bf16.msra.mxu0 %v406
    %1994 = vmatprep.mubr.bf16.mxu0 %v1859
    %1995 = vmatmul.mubr.bf16.gmra.mxu0 %v1960
    %v1996 = vpop.f32.mrf.mxu0
    %v1997 = vadd.f32 %v219, %v1996
    %v1998 = vpop.f32.mrf.mxu0
    %v1999 = vadd.f32 %v223, %v1998
    %v2000 = vpop.f32.mrf.mxu0
    %v2001 = vadd.f32 %v219, %v2000
    %v2002 = vpop.f32.mrf.mxu0
    %v2003 = vadd.f32 %v223, %v2002
    %2004 = vdwg.mxu0
    %2005 = vmatprep.subr.bf16.mxu0 %v437
    %2006 = vmatpush1.bf16.msra.mxu0 %v436
    %2007 = vmatprep.subr.bf16.mxu0 %v435
    %2008 = vmatpush1.bf16.msra.mxu0 %v434
    %2009 = vmatprep.subr.bf16.mxu0 %v433
    %2010 = vmatpush1.bf16.msra.mxu0 %v432
    %2011 = vmatprep.subr.bf16.mxu0 %v431
    %2012 = vmatpush1.bf16.msra.mxu0 %v430
    %2013 = vmatprep.subr.bf16.mxu0 %v429
    %2014 = vmatpush1.bf16.msra.mxu0 %v428
    %2015 = vmatprep.subr.bf16.mxu0 %v427
    %2016 = vmatpush1.bf16.msra.mxu0 %v426
    %2017 = vmatprep.subr.bf16.mxu0 %v425
    %2018 = vmatpush1.bf16.msra.mxu0 %v424
    %2019 = vmatprep.subr.bf16.mxu0 %v423
    %2020 = vmatpush1.bf16.msra.mxu0 %v422
    %2021 = vmatprep.subr.bf16.mxu0 0
    %2022 = vmatpush2.bf16.msra.mxu0 0
    %2023 = vmatprep.subr.bf16.mxu0 0
    %2024 = vmatpush2.bf16.msra.mxu0 0
    %2025 = vmatprep.subr.bf16.mxu0 0
    %2026 = vmatpush2.bf16.msra.mxu0 0
    %2027 = vmatprep.subr.bf16.mxu0 0
    %2028 = vmatpush2.bf16.msra.mxu0 0
    %2029 = vmatprep.subr.bf16.mxu0 0
    %2030 = vmatpush2.bf16.msra.mxu0 0
    %2031 = vmatprep.subr.bf16.mxu0 0
    %2032 = vmatpush2.bf16.msra.mxu0 0
    %2033 = vmatprep.subr.bf16.mxu0 0
    %2034 = vmatpush2.bf16.msra.mxu0 0
    %2035 = vmatprep.subr.bf16.mxu0 0
    %2036 = vmatpush2.bf16.msra.mxu0 0
    %2037 = vmatprep.mubr.bf16.mxu0 0
    %2038 = vmatmul.mubr.bf16.gmra.mxu0 %v1860
    %v2039 = vpop.f32.mrf.mxu0
    %v2040 = vadd.f32 %v1997, %v2039
    %v2041 = vpop.f32.mrf.mxu0
    %v2042 = vadd.f32 %v1999, %v2041
    %v2043 = vpop.f32.mrf.mxu0
    %v2044 = vadd.f32 %v2001, %v2043
    %v2045 = vpop.f32.mrf.mxu0
    %v2046 = vadd.f32 %v2003, %v2045
    %2047 = vdwg.mxu0
    %v2048 = vtanh.pop %v2040
    %v2049 = vtanh.pop %v2042
    %v2050 = vtanh.pop %v2044
    %v2051 = vtanh.pop %v2046
    %v2052 = vpack.c.bf16 %v2050, %v2048
    %v2053 = vpack.c.bf16 %v2051, %v2049
    %v2054 = vpack.c.bf16 %v1951, %v1949
    %v2055 = vpack.c.bf16 %v1952, %v1950
    %2056 = vmatprep.subr.bf16.mxu0 %v785
    %2057 = vmatpush1.bf16.msra.mxu0 %v784
    %2058 = vmatprep.subr.bf16.mxu0 %v783
    %2059 = vmatpush1.bf16.msra.mxu0 %v782
    %2060 = vmatprep.subr.bf16.mxu0 %v781
    %2061 = vmatpush1.bf16.msra.mxu0 %v780
    %2062 = vmatprep.subr.bf16.mxu0 %v779
    %2063 = vmatpush1.bf16.msra.mxu0 %v778
    %2064 = vmatprep.subr.bf16.mxu0 %v777
    %2065 = vmatpush1.bf16.msra.mxu0 %v776
    %2066 = vmatprep.subr.bf16.mxu0 %v775
    %2067 = vmatpush1.bf16.msra.mxu0 %v774
    %2068 = vmatprep.subr.bf16.mxu0 %v773
    %2069 = vmatpush1.bf16.msra.mxu0 %v772
    %2070 = vmatprep.subr.bf16.mxu0 %v771
    %2071 = vmatpush1.bf16.msra.mxu0 %v770
    %2072 = vmatprep.subr.bf16.mxu0 %v801
    %2073 = vmatpush2.bf16.msra.mxu0 %v800
    %2074 = vmatprep.subr.bf16.mxu0 %v799
    %2075 = vmatpush2.bf16.msra.mxu0 %v798
    %2076 = vmatprep.subr.bf16.mxu0 %v797
    %2077 = vmatpush2.bf16.msra.mxu0 %v796
    %2078 = vmatprep.subr.bf16.mxu0 %v795
    %2079 = vmatpush2.bf16.msra.mxu0 %v794
    %2080 = vmatprep.subr.bf16.mxu0 %v793
    %2081 = vmatpush2.bf16.msra.mxu0 %v792
    %2082 = vmatprep.subr.bf16.mxu0 %v791
    %2083 = vmatpush2.bf16.msra.mxu0 %v790
    %2084 = vmatprep.subr.bf16.mxu0 %v789
    %2085 = vmatpush2.bf16.msra.mxu0 %v788
    %2086 = vmatprep.subr.bf16.mxu0 %v787
    %2087 = vmatpush2.bf16.msra.mxu0 %v786
    %2088 = vmatprep.mubr.bf16.mxu0 %v2053
    %2089 = vmatmul.mubr.bf16.gmra.mxu0 %v2052
    %v2090 = vpop.f32.mrf.mxu0
    %v2091 = vadd.f32 %v231, %v2090
    %v2092 = vpop.f32.mrf.mxu0
    %v2093 = vadd.f32 %v235, %v2092
    %v2094 = vpop.f32.mrf.mxu0
    %v2095 = vadd.f32 %v231, %v2094
    %v2096 = vpop.f32.mrf.mxu0
    %v2097 = vadd.f32 %v235, %v2096
    %2098 = vdwg.mxu0
    %2099 = vmatprep.subr.bf16.mxu0 %v817
    %2100 = vmatpush1.bf16.msra.mxu0 %v816
    %2101 = vmatprep.subr.bf16.mxu0 %v815
    %2102 = vmatpush1.bf16.msra.mxu0 %v814
    %2103 = vmatprep.subr.bf16.mxu0 %v813
    %2104 = vmatpush1.bf16.msra.mxu0 %v812
    %2105 = vmatprep.subr.bf16.mxu0 %v811
    %2106 = vmatpush1.bf16.msra.mxu0 %v810
    %2107 = vmatprep.subr.bf16.mxu0 %v809
    %2108 = vmatpush1.bf16.msra.mxu0 %v808
    %2109 = vmatprep.subr.bf16.mxu0 %v807
    %2110 = vmatpush1.bf16.msra.mxu0 %v806
    %2111 = vmatprep.subr.bf16.mxu0 %v805
    %2112 = vmatpush1.bf16.msra.mxu0 %v804
    %2113 = vmatprep.subr.bf16.mxu0 %v803
    %2114 = vmatpush1.bf16.msra.mxu0 %v802
    %2115 = vmatprep.subr.bf16.mxu0 %v833
    %2116 = vmatpush2.bf16.msra.mxu0 %v832
    %2117 = vmatprep.subr.bf16.mxu0 %v831
    %2118 = vmatpush2.bf16.msra.mxu0 %v830
    %2119 = vmatprep.subr.bf16.mxu0 %v829
    %2120 = vmatpush2.bf16.msra.mxu0 %v828
    %2121 = vmatprep.subr.bf16.mxu0 %v827
    %2122 = vmatpush2.bf16.msra.mxu0 %v826
    %2123 = vmatprep.subr.bf16.mxu0 %v825
    %2124 = vmatpush2.bf16.msra.mxu0 %v824
    %2125 = vmatprep.subr.bf16.mxu0 %v823
    %2126 = vmatpush2.bf16.msra.mxu0 %v822
    %2127 = vmatprep.subr.bf16.mxu0 %v821
    %2128 = vmatpush2.bf16.msra.mxu0 %v820
    %2129 = vmatprep.subr.bf16.mxu0 %v819
    %2130 = vmatpush2.bf16.msra.mxu0 %v818
    %2131 = vmatprep.mubr.bf16.mxu0 %v2055
    %2132 = vmatmul.mubr.bf16.gmra.mxu0 %v2054
    %v2133 = vpop.f32.mrf.mxu0
    %v2134 = vadd.f32 %v2091, %v2133
    %v2135 = vpop.f32.mrf.mxu0
    %v2136 = vadd.f32 %v2093, %v2135
    %v2137 = vpop.f32.mrf.mxu0
    %v2138 = vadd.f32 %v2095, %v2137
    %v2139 = vpop.f32.mrf.mxu0
    %v2140 = vadd.f32 %v2097, %v2139
    %2141 = vdwg.mxu0
    %v2142 = vtanh.pop %v2134
    %v2143 = vtanh.pop %v2136
    %v2144 = vtanh.pop %v2138
    %v2145 = vtanh.pop %v2140
    %s2146 = scalar_lea.vmem [#allocation2], 56
    %v2147 = vld [vmem:[%s2146] sm:$0xf]
    %v2148 = vld [vmem:[%s2146 + $0x4] sm:$0xf]
    %v2151 = vunpack.c.l.b16 %v2147
    %v2152 = vunpack.c.l.b16 %v2148
    %v2153 = vpack.c.b16 %v2152, %v2151
    %2155 = vmatprep.subr.bf16.mxu0 %v405
    %2156 = vmatpush1.bf16.msra.mxu0 %v404
    %2157 = vmatprep.subr.bf16.mxu0 %v403
    %2158 = vmatpush1.bf16.msra.mxu0 %v402
    %2159 = vmatprep.subr.bf16.mxu0 %v401
    %2160 = vmatpush1.bf16.msra.mxu0 %v400
    %2161 = vmatprep.subr.bf16.mxu0 %v399
    %2162 = vmatpush1.bf16.msra.mxu0 %v398
    %2163 = vmatprep.subr.bf16.mxu0 %v397
    %2164 = vmatpush1.bf16.msra.mxu0 %v396
    %2165 = vmatprep.subr.bf16.mxu0 %v395
    %2166 = vmatpush1.bf16.msra.mxu0 %v394
    %2167 = vmatprep.subr.bf16.mxu0 %v393
    %2168 = vmatpush1.bf16.msra.mxu0 %v392
    %2169 = vmatprep.subr.bf16.mxu0 %v391
    %2170 = vmatpush1.bf16.msra.mxu0 %v390
    %2171 = vmatprep.subr.bf16.mxu0 %v421
    %2172 = vmatpush2.bf16.msra.mxu0 %v420
    %2173 = vmatprep.subr.bf16.mxu0 %v419
    %2174 = vmatpush2.bf16.msra.mxu0 %v418
    %2175 = vmatprep.subr.bf16.mxu0 %v417
    %2176 = vmatpush2.bf16.msra.mxu0 %v416
    %2177 = vmatprep.subr.bf16.mxu0 %v415
    %2178 = vmatpush2.bf16.msra.mxu0 %v414
    %2179 = vmatprep.subr.bf16.mxu0 %v413
    %2180 = vmatpush2.bf16.msra.mxu0 %v412
    %2181 = vmatprep.subr.bf16.mxu0 %v411
    %2182 = vmatpush2.bf16.msra.mxu0 %v410
    %2183 = vmatprep.subr.bf16.mxu0 %v409
    %2184 = vmatpush2.bf16.msra.mxu0 %v408
    %2185 = vmatprep.subr.bf16.mxu0 %v407
    %2186 = vmatpush2.bf16.msra.mxu0 %v406
    %2187 = vmatprep.mubr.bf16.mxu0 %v2052
    %2188 = vmatmul.mubr.bf16.gmra.mxu0 %v2153
    %v2189 = vpop.f32.mrf.mxu0
    %v2190 = vadd.f32 %v219, %v2189
    %v2191 = vpop.f32.mrf.mxu0
    %v2192 = vadd.f32 %v223, %v2191
    %v2193 = vpop.f32.mrf.mxu0
    %v2194 = vadd.f32 %v219, %v2193
    %v2195 = vpop.f32.mrf.mxu0
    %v2196 = vadd.f32 %v223, %v2195
    %2197 = vdwg.mxu0
    %2198 = vmatprep.subr.bf16.mxu0 %v437
    %2199 = vmatpush1.bf16.msra.mxu0 %v436
    %2200 = vmatprep.subr.bf16.mxu0 %v435
    %2201 = vmatpush1.bf16.msra.mxu0 %v434
    %2202 = vmatprep.subr.bf16.mxu0 %v433
    %2203 = vmatpush1.bf16.msra.mxu0 %v432
    %2204 = vmatprep.subr.bf16.mxu0 %v431
    %2205 = vmatpush1.bf16.msra.mxu0 %v430
    %2206 = vmatprep.subr.bf16.mxu0 %v429
    %2207 = vmatpush1.bf16.msra.mxu0 %v428
    %2208 = vmatprep.subr.bf16.mxu0 %v427
    %2209 = vmatpush1.bf16.msra.mxu0 %v426
    %2210 = vmatprep.subr.bf16.mxu0 %v425
    %2211 = vmatpush1.bf16.msra.mxu0 %v424
    %2212 = vmatprep.subr.bf16.mxu0 %v423
    %2213 = vmatpush1.bf16.msra.mxu0 %v422
    %2214 = vmatprep.subr.bf16.mxu0 0
    %2215 = vmatpush2.bf16.msra.mxu0 0
    %2216 = vmatprep.subr.bf16.mxu0 0
    %2217 = vmatpush2.bf16.msra.mxu0 0
    %2218 = vmatprep.subr.bf16.mxu0 0
    %2219 = vmatpush2.bf16.msra.mxu0 0
    %2220 = vmatprep.subr.bf16.mxu0 0
    %2221 = vmatpush2.bf16.msra.mxu0 0
    %2222 = vmatprep.subr.bf16.mxu0 0
    %2223 = vmatpush2.bf16.msra.mxu0 0
    %2224 = vmatprep.subr.bf16.mxu0 0
    %2225 = vmatpush2.bf16.msra.mxu0 0
    %2226 = vmatprep.subr.bf16.mxu0 0
    %2227 = vmatpush2.bf16.msra.mxu0 0
    %2228 = vmatprep.subr.bf16.mxu0 0
    %2229 = vmatpush2.bf16.msra.mxu0 0
    %2230 = vmatprep.mubr.bf16.mxu0 0
    %2231 = vmatmul.mubr.bf16.gmra.mxu0 %v2053
    %v2232 = vpop.f32.mrf.mxu0
    %v2233 = vadd.f32 %v2190, %v2232
    %v2234 = vpop.f32.mrf.mxu0
    %v2235 = vadd.f32 %v2192, %v2234
    %v2236 = vpop.f32.mrf.mxu0
    %v2237 = vadd.f32 %v2194, %v2236
    %v2238 = vpop.f32.mrf.mxu0
    %v2239 = vadd.f32 %v2196, %v2238
    %2240 = vdwg.mxu0
    %v2241 = vtanh.pop %v2233
    %v2242 = vtanh.pop %v2235
    %v2243 = vtanh.pop %v2237
    %v2244 = vtanh.pop %v2239
    %v2245 = vpack.c.bf16 %v2243, %v2241
    %v2246 = vpack.c.bf16 %v2244, %v2242
    %v2247 = vpack.c.bf16 %v2144, %v2142
    %v2248 = vpack.c.bf16 %v2145, %v2143
    %2249 = vmatprep.subr.bf16.mxu0 %v785
    %2250 = vmatpush1.bf16.msra.mxu0 %v784
    %2251 = vmatprep.subr.bf16.mxu0 %v783
    %2252 = vmatpush1.bf16.msra.mxu0 %v782
    %2253 = vmatprep.subr.bf16.mxu0 %v781
    %2254 = vmatpush1.bf16.msra.mxu0 %v780
    %2255 = vmatprep.subr.bf16.mxu0 %v779
    %2256 = vmatpush1.bf16.msra.mxu0 %v778
    %2257 = vmatprep.subr.bf16.mxu0 %v777
    %2258 = vmatpush1.bf16.msra.mxu0 %v776
    %2259 = vmatprep.subr.bf16.mxu0 %v775
    %2260 = vmatpush1.bf16.msra.mxu0 %v774
    %2261 = vmatprep.subr.bf16.mxu0 %v773
    %2262 = vmatpush1.bf16.msra.mxu0 %v772
    %2263 = vmatprep.subr.bf16.mxu0 %v771
    %2264 = vmatpush1.bf16.msra.mxu0 %v770
    %2265 = vmatprep.subr.bf16.mxu0 %v801
    %2266 = vmatpush2.bf16.msra.mxu0 %v800
    %2267 = vmatprep.subr.bf16.mxu0 %v799
    %2268 = vmatpush2.bf16.msra.mxu0 %v798
    %2269 = vmatprep.subr.bf16.mxu0 %v797
    %2270 = vmatpush2.bf16.msra.mxu0 %v796
    %2271 = vmatprep.subr.bf16.mxu0 %v795
    %2272 = vmatpush2.bf16.msra.mxu0 %v794
    %2273 = vmatprep.subr.bf16.mxu0 %v793
    %2274 = vmatpush2.bf16.msra.mxu0 %v792
    %2275 = vmatprep.subr.bf16.mxu0 %v791
    %2276 = vmatpush2.bf16.msra.mxu0 %v790
    %2277 = vmatprep.subr.bf16.mxu0 %v789
    %2278 = vmatpush2.bf16.msra.mxu0 %v788
    %2279 = vmatprep.subr.bf16.mxu0 %v787
    %2280 = vmatpush2.bf16.msra.mxu0 %v786
    %2281 = vmatprep.mubr.bf16.mxu0 %v2246
    %2282 = vmatmul.mubr.bf16.gmra.mxu0 %v2245
    %v2283 = vpop.f32.mrf.mxu0
    %v2284 = vadd.f32 %v231, %v2283
    %v2285 = vpop.f32.mrf.mxu0
    %v2286 = vadd.f32 %v235, %v2285
    %v2287 = vpop.f32.mrf.mxu0
    %v2288 = vadd.f32 %v231, %v2287
    %v2289 = vpop.f32.mrf.mxu0
    %v2290 = vadd.f32 %v235, %v2289
    %2291 = vdwg.mxu0
    %2292 = vmatprep.subr.bf16.mxu0 %v817
    %2293 = vmatpush1.bf16.msra.mxu0 %v816
    %2294 = vmatprep.subr.bf16.mxu0 %v815
    %2295 = vmatpush1.bf16.msra.mxu0 %v814
    %2296 = vmatprep.subr.bf16.mxu0 %v813
    %2297 = vmatpush1.bf16.msra.mxu0 %v812
    %2298 = vmatprep.subr.bf16.mxu0 %v811
    %2299 = vmatpush1.bf16.msra.mxu0 %v810
    %2300 = vmatprep.subr.bf16.mxu0 %v809
    %2301 = vmatpush1.bf16.msra.mxu0 %v808
    %2302 = vmatprep.subr.bf16.mxu0 %v807
    %2303 = vmatpush1.bf16.msra.mxu0 %v806
    %2304 = vmatprep.subr.bf16.mxu0 %v805
    %2305 = vmatpush1.bf16.msra.mxu0 %v804
    %2306 = vmatprep.subr.bf16.mxu0 %v803
    %2307 = vmatpush1.bf16.msra.mxu0 %v802
    %2308 = vmatprep.subr.bf16.mxu0 %v833
    %2309 = vmatpush2.bf16.msra.mxu0 %v832
    %2310 = vmatprep.subr.bf16.mxu0 %v831
    %2311 = vmatpush2.bf16.msra.mxu0 %v830
    %2312 = vmatprep.subr.bf16.mxu0 %v829
    %2313 = vmatpush2.bf16.msra.mxu0 %v828
    %2314 = vmatprep.subr.bf16.mxu0 %v827
    %2315 = vmatpush2.bf16.msra.mxu0 %v826
    %2316 = vmatprep.subr.bf16.mxu0 %v825
    %2317 = vmatpush2.bf16.msra.mxu0 %v824
    %2318 = vmatprep.subr.bf16.mxu0 %v823
    %2319 = vmatpush2.bf16.msra.mxu0 %v822
    %2320 = vmatprep.subr.bf16.mxu0 %v821
    %2321 = vmatpush2.bf16.msra.mxu0 %v820
    %2322 = vmatprep.subr.bf16.mxu0 %v819
    %2323 = vmatpush2.bf16.msra.mxu0 %v818
    %2324 = vmatprep.mubr.bf16.mxu0 %v2248
    %2325 = vmatmul.mubr.bf16.gmra.mxu0 %v2247
    %v2326 = vpop.f32.mrf.mxu0
    %v2327 = vadd.f32 %v2284, %v2326
    %v2328 = vpop.f32.mrf.mxu0
    %v2329 = vadd.f32 %v2286, %v2328
    %v2330 = vpop.f32.mrf.mxu0
    %v2331 = vadd.f32 %v2288, %v2330
    %v2332 = vpop.f32.mrf.mxu0
    %v2333 = vadd.f32 %v2290, %v2332
    %2334 = vdwg.mxu0
    %v2335 = vtanh.pop %v2327
    %v2336 = vtanh.pop %v2329
    %v2337 = vtanh.pop %v2331
    %v2338 = vtanh.pop %v2333
    %v2339 = vpack.c.bf16 %v2337, %v2335
    %v2340 = vpack.c.bf16 %v2338, %v2336
    %v2341 = vld [vmem:[#allocation8] sm:$0xf]
    %v2342 = vld [vmem:[#allocation8 + $0x4] sm:$0xf]
    %v2343 = vld [vmem:[#allocation8 + $0x8] sm:$0xf]
    %v2344 = vld [vmem:[#allocation8 + $0xc] sm:$0xf]
    %v2345 = vld [vmem:[#allocation8 + $0x10] sm:$0xf]
    %v2346 = vld [vmem:[#allocation8 + $0x14] sm:$0xf]
    %v2347 = vld [vmem:[#allocation8 + $0x18] sm:$0xf]
    %v2348 = vld [vmem:[#allocation8 + $0x1c] sm:$0xf]
    %v2349 = vld [vmem:[#allocation8 + $0x20] sm:$0xf]
    %v2350 = vld [vmem:[#allocation8 + $0x24] sm:$0xf]
    %v2351 = vld [vmem:[#allocation8 + $0x28] sm:$0xf]
    %v2352 = vld [vmem:[#allocation8 + $0x2c] sm:$0xf]
    %v2353 = vld [vmem:[#allocation8 + $0x30] sm:$0xf]
    %v2354 = vld [vmem:[#allocation8 + $0x34] sm:$0xf]
    %v2355 = vld [vmem:[#allocation8 + $0x38] sm:$0xf]
    %v2356 = vld [vmem:[#allocation8 + $0x3c] sm:$0xf]
    %v2357 = vld [vmem:[#allocation8 + $0x40] sm:$0xf]
    %v2358 = vld [vmem:[#allocation8 + $0x44] sm:$0xf]
    %v2359 = vld [vmem:[#allocation8 + $0x48] sm:$0xf]
    %v2360 = vld [vmem:[#allocation8 + $0x4c] sm:$0xf]
    %v2361 = vld [vmem:[#allocation8 + $0x50] sm:$0xf]
    %v2362 = vld [vmem:[#allocation8 + $0x54] sm:$0xf]
    %v2363 = vld [vmem:[#allocation8 + $0x58] sm:$0xf]
    %v2364 = vld [vmem:[#allocation8 + $0x5c] sm:$0xf]
    %v2365 = vld [vmem:[#allocation8 + $0x60] sm:$0xf]
    %v2366 = vld [vmem:[#allocation8 + $0x64] sm:$0xf]
    %v2367 = vld [vmem:[#allocation8 + $0x68] sm:$0xf]
    %v2368 = vld [vmem:[#allocation8 + $0x6c] sm:$0xf]
    %v2369 = vld [vmem:[#allocation8 + $0x70] sm:$0xf]
    %v2370 = vld [vmem:[#allocation8 + $0x74] sm:$0xf]
    %v2371 = vld [vmem:[#allocation8 + $0x78] sm:$0xf]
    %v2372 = vld [vmem:[#allocation8 + $0x7c] sm:$0xf]
    %v2373 = vld [vmem:[%s6] sm:$0x1]
    %v2375 = vlaneseq
    %v2376 = vshrl.u32 %v2375, 7
    %v2377 = vsub.s32 0, %v2376
    %v2378 = vrot.slane %v2373, %v2377
    %v2412 = vunpack.c.l.b16 %v2341
    %v2413 = vunpack.c.l.b16 %v2342
    %v2414 = vunpack.c.l.b16 %v2343
    %v2415 = vunpack.c.l.b16 %v2344
    %v2416 = vunpack.c.l.b16 %v2345
    %v2417 = vunpack.c.l.b16 %v2346
    %v2418 = vunpack.c.l.b16 %v2347
    %v2419 = vunpack.c.l.b16 %v2348
    %v2420 = vunpack.c.l.b16 %v2349
    %v2421 = vunpack.c.l.b16 %v2350
    %v2422 = vunpack.c.l.b16 %v2351
    %v2423 = vunpack.c.l.b16 %v2352
    %v2424 = vunpack.c.l.b16 %v2353
    %v2425 = vunpack.c.l.b16 %v2354
    %v2426 = vunpack.c.l.b16 %v2355
    %v2427 = vunpack.c.l.b16 %v2356
    %v2428 = vunpack.c.l.b16 %v2357
    %v2429 = vunpack.c.l.b16 %v2358
    %v2430 = vunpack.c.l.b16 %v2359
    %v2431 = vunpack.c.l.b16 %v2360
    %v2432 = vunpack.c.l.b16 %v2361
    %v2433 = vunpack.c.l.b16 %v2362
    %v2434 = vunpack.c.l.b16 %v2363
    %v2435 = vunpack.c.l.b16 %v2364
    %v2436 = vunpack.c.l.b16 %v2365
    %v2437 = vunpack.c.l.b16 %v2366
    %v2438 = vunpack.c.l.b16 %v2367
    %v2439 = vunpack.c.l.b16 %v2368
    %v2440 = vunpack.c.l.b16 %v2369
    %v2441 = vunpack.c.l.b16 %v2370
    %v2442 = vunpack.c.l.b16 %v2371
    %v2443 = vunpack.c.l.b16 %v2372
    %v2444 = vpack.c.b16 %v2413, %v2412
    %v2445 = vpack.c.b16 %v2415, %v2414
    %v2446 = vpack.c.b16 %v2417, %v2416
    %v2447 = vpack.c.b16 %v2419, %v2418
    %v2448 = vpack.c.b16 %v2421, %v2420
    %v2449 = vpack.c.b16 %v2423, %v2422
    %v2450 = vpack.c.b16 %v2425, %v2424
    %v2451 = vpack.c.b16 %v2427, %v2426
    %v2452 = vpack.c.b16 %v2429, %v2428
    %v2453 = vpack.c.b16 %v2431, %v2430
    %v2454 = vpack.c.b16 %v2433, %v2432
    %v2455 = vpack.c.b16 %v2435, %v2434
    %v2456 = vpack.c.b16 %v2437, %v2436
    %v2457 = vpack.c.b16 %v2439, %v2438
    %v2458 = vpack.c.b16 %v2441, %v2440
    %v2459 = vpack.c.b16 %v2443, %v2442
    %2476 = vmatprep.subr.bf16.mxu0 0
    %2477 = vmatpush1.bf16.msra.mxu0 %v2451
    %2478 = vmatprep.subr.bf16.mxu0 0
    %2479 = vmatpush1.bf16.msra.mxu0 %v2450
    %2480 = vmatprep.subr.bf16.mxu0 0
    %2481 = vmatpush1.bf16.msra.mxu0 %v2449
    %2482 = vmatprep.subr.bf16.mxu0 0
    %2483 = vmatpush1.bf16.msra.mxu0 %v2448
    %2484 = vmatprep.subr.bf16.mxu0 0
    %2485 = vmatpush1.bf16.msra.mxu0 %v2447
    %2486 = vmatprep.subr.bf16.mxu0 0
    %2487 = vmatpush1.bf16.msra.mxu0 %v2446
    %2488 = vmatprep.subr.bf16.mxu0 0
    %2489 = vmatpush1.bf16.msra.mxu0 %v2445
    %2490 = vmatprep.subr.bf16.mxu0 0
    %2491 = vmatpush1.bf16.msra.mxu0 %v2444
    %2492 = vmatprep.subr.bf16.mxu0 0
    %2493 = vmatpush2.bf16.msra.mxu0 %v2459
    %2494 = vmatprep.subr.bf16.mxu0 0
    %2495 = vmatpush2.bf16.msra.mxu0 %v2458
    %2496 = vmatprep.subr.bf16.mxu0 0
    %2497 = vmatpush2.bf16.msra.mxu0 %v2457
    %2498 = vmatprep.subr.bf16.mxu0 0
    %2499 = vmatpush2.bf16.msra.mxu0 %v2456
    %2500 = vmatprep.subr.bf16.mxu0 0
    %2501 = vmatpush2.bf16.msra.mxu0 %v2455
    %2502 = vmatprep.subr.bf16.mxu0 0
    %2503 = vmatpush2.bf16.msra.mxu0 %v2454
    %2504 = vmatprep.subr.bf16.mxu0 0
    %2505 = vmatpush2.bf16.msra.mxu0 %v2453
    %2506 = vmatprep.subr.bf16.mxu0 0
    %2507 = vmatpush2.bf16.msra.mxu0 %v2452
    %2508 = vmatprep.mubr.bf16.mxu0 %v2340
    %2509 = vmatmul.mubr.bf16.gmra.mxu0 %v2339
    %v2510 = vpop.f32.mrf.mxu0
    %v2511 = vadd.f32 %v2378, %v2510
    %v2512 = vpop.f32.mrf.mxu0
    %v2513 = vpop.f32.mrf.mxu0
    %v2514 = vadd.f32 %v2378, %v2513
    %v2515 = vpop.f32.mrf.mxu0
    %2516 = vdwg.mxu0
    %v2517 = vpack.c.bf16 %v2514, %v2511
    %v2518 = vld [vmem:[#allocation10] sm:$0xf]
    %v2519 = vld [vmem:[#allocation10 + $0x4] sm:$0xf]
    %v2520 = vld [vmem:[#allocation10 + $0x8] sm:$0xf]
    %v2521 = vld [vmem:[#allocation10 + $0xc] sm:$0xf]
    %v2522 = vld [vmem:[#allocation10 + $0x10] sm:$0xf]
    %v2523 = vld [vmem:[#allocation10 + $0x14] sm:$0xf]
    %v2524 = vld [vmem:[#allocation10 + $0x18] sm:$0xf]
    %v2525 = vld [vmem:[#allocation10 + $0x1c] sm:$0xf]
    %v2526 = vld [vmem:[#allocation10 + $0x20] sm:$0xf]
    %v2527 = vld [vmem:[#allocation10 + $0x24] sm:$0xf]
    %v2528 = vld [vmem:[#allocation10 + $0x28] sm:$0xf]
    %v2529 = vld [vmem:[#allocation10 + $0x2c] sm:$0xf]
    %v2530 = vld [vmem:[#allocation10 + $0x30] sm:$0xf]
    %v2531 = vld [vmem:[#allocation10 + $0x34] sm:$0xf]
    %v2532 = vld [vmem:[#allocation10 + $0x38] sm:$0xf]
    %v2533 = vld [vmem:[#allocation10 + $0x3c] sm:$0xf]
    %v2534 = vld [vmem:[%s8] sm:$0x1]
    %v2536 = vlaneseq
    %v2537 = vshrl.u32 %v2536, 7
    %v2538 = vsub.s32 0, %v2537
    %v2539 = vrot.slane %v2534, %v2538
    %v2557 = vunpack.c.l.b16 %v2518
    %v2558 = vunpack.c.l.b16 %v2519
    %v2559 = vunpack.c.l.b16 %v2520
    %v2560 = vunpack.c.l.b16 %v2521
    %v2561 = vunpack.c.l.b16 %v2522
    %v2562 = vunpack.c.l.b16 %v2523
    %v2563 = vunpack.c.l.b16 %v2524
    %v2564 = vunpack.c.l.b16 %v2525
    %v2565 = vunpack.c.l.b16 %v2526
    %v2566 = vunpack.c.l.b16 %v2527
    %v2567 = vunpack.c.l.b16 %v2528
    %v2568 = vunpack.c.l.b16 %v2529
    %v2569 = vunpack.c.l.b16 %v2530
    %v2570 = vunpack.c.l.b16 %v2531
    %v2571 = vunpack.c.l.b16 %v2532
    %v2572 = vunpack.c.l.b16 %v2533
    %v2573 = vpack.c.b16 %v2558, %v2557
    %v2574 = vpack.c.b16 %v2560, %v2559
    %v2575 = vpack.c.b16 %v2562, %v2561
    %v2576 = vpack.c.b16 %v2564, %v2563
    %v2577 = vpack.c.b16 %v2566, %v2565
    %v2578 = vpack.c.b16 %v2568, %v2567
    %v2579 = vpack.c.b16 %v2570, %v2569
    %v2580 = vpack.c.b16 %v2572, %v2571
    %2589 = vmatprep.subr.bf16.mxu0 0
    %2590 = vmatpush1.bf16.msra.mxu0 %v2580
    %2591 = vmatprep.subr.bf16.mxu0 0
    %2592 = vmatpush1.bf16.msra.mxu0 %v2579
    %2593 = vmatprep.subr.bf16.mxu0 0
    %2594 = vmatpush1.bf16.msra.mxu0 %v2578
    %2595 = vmatprep.subr.bf16.mxu0 0
    %2596 = vmatpush1.bf16.msra.mxu0 %v2577
    %2597 = vmatprep.subr.bf16.mxu0 0
    %2598 = vmatpush1.bf16.msra.mxu0 %v2576
    %2599 = vmatprep.subr.bf16.mxu0 0
    %2600 = vmatpush1.bf16.msra.mxu0 %v2575
    %2601 = vmatprep.subr.bf16.mxu0 0
    %2602 = vmatpush1.bf16.msra.mxu0 %v2574
    %2603 = vmatprep.subr.bf16.mxu0 0
    %2604 = vmatpush1.bf16.msra.mxu0 %v2573
    %2605 = vmatprep.subr.bf16.mxu0 0
    %2606 = vmatpush2.bf16.msra.mxu0 0
    %2607 = vmatprep.subr.bf16.mxu0 0
    %2608 = vmatpush2.bf16.msra.mxu0 0
    %2609 = vmatprep.subr.bf16.mxu0 0
    %2610 = vmatpush2.bf16.msra.mxu0 0
    %2611 = vmatprep.subr.bf16.mxu0 0
    %2612 = vmatpush2.bf16.msra.mxu0 0
    %2613 = vmatprep.subr.bf16.mxu0 0
    %2614 = vmatpush2.bf16.msra.mxu0 0
    %2615 = vmatprep.subr.bf16.mxu0 0
    %2616 = vmatpush2.bf16.msra.mxu0 0
    %2617 = vmatprep.subr.bf16.mxu0 0
    %2618 = vmatpush2.bf16.msra.mxu0 0
    %2619 = vmatprep.subr.bf16.mxu0 0
    %2620 = vmatpush2.bf16.msra.mxu0 0
    %2621 = vmatprep.mubr.bf16.mxu0 0
    %2622 = vmatmul.mubr.bf16.gmra.mxu0 %v2517
    %v2623 = vpop.f32.mrf.mxu0
    %v2624 = vadd.f32 %v2539, %v2623
    %v2625 = vpop.f32.mrf.mxu0
    %v2626 = vpop.f32.mrf.mxu0
    %v2627 = vadd.f32 %v2539, %v2626
    %v2628 = vpop.f32.mrf.mxu0
    %2629 = vdwg.mxu0
    %2630 = vst [vmem:[#allocation11] sm:$0xff] %v2624
    %2631 = vst [vmem:[#allocation11 + $0x8] sm:$0xff] %v2627
    // Predicated region
    $region58: #{tpu_custom_call.1} parent=1 // pred_check
      _
    $region59: #{tpu_custom_call.1} parent=1 // pred_check_branch
      %2633 = sbr.rel (0) target = $region61
    $region60: #{tpu_custom_call.1} parent=1 // pred_region
      %s2635 = ssub.s32 256, 256
      %2636 = vsyncadd [#allocation4], %s2635
      %s2637 = sshll.u32 [#allocation11], 4
      %s2638 = int_to_ptr.vmem [resolvable:$true] %s2637
      %2643 = dma.vmem_to_hbm [thread:$0]  %s2638, 256, %s9, [#allocation4], 128, 128, 8
    $region61: #{tpu_custom_call.1} parent=1 // pred_fallthru
      _
    // Predicated region
    $region62: #{tpu_custom_call.1} parent=1 // pred_check
      _
    $region63: #{tpu_custom_call.1} parent=1 // pred_check_branch
      %2645 = sbr.rel (0) target = $region65
    $region64: #{tpu_custom_call.1} parent=1 // pred_region
      %2646 = dma.done [#allocation4], 256
    $region65: #{tpu_custom_call.1} parent=1 // pred_fallthru
      _
    %2647 = vsyncpa [#allocation3], 1
    %2648 = vsyncpa [#allocation6], 1
    %2649 = vsyncpa [#allocation9], 1
    %2650 = vsyncpa [#allocation4], 1

</llo_original>
